<compile_context>
chip_gen: v7x
topology: tpu7x:2x2x1
jax: 0.10.0
libtpu: 0.0.40
codegen_flags: <defaults>
</compile_context>

<pallas_src>
import math
import jax
import jax.numpy as jnp
from jax.experimental import pallas as pl
from jax.experimental.pallas import tpu as pltpu  # noqa: F401  (kept for TPU-specific tuning hooks)

# ---- problem sizes (small, consistent with the module) ----
B, SQ, SK = 2, 8, 8          # batch, query seq, key/value (encoder) seq
H = 32                       # hidden_size
NP = 4                       # num_attention_heads (per partition, world_size=1)
HN = H // NP                 # hidden_size_per_attention_head
SCALE = 1.0 / math.sqrt(HN)


def _cross_attention_kernel(hs_ref, es_ref, mask_ref,
                            wq_ref, bq_ref, wkv_ref, bkv_ref, wd_ref, bd_ref,
                            out_ref):
    f32 = jnp.float32
    hs = hs_ref[...]                       # [B, SQ, H]
    es = es_ref[...]                       # [B, SK, H]
    mask = mask_ref[...]                   # [B, SQ, SK]
    neg_bias = -10000.0 * (1.0 - mask)     # hoisted: computed once, reused for every head

    # Broadcast the shared projection weights along a batch dim so every matmul below is a
    # canonical single-batch-dim dot_general (the supported batched-matmul form on Mosaic).
    wq = jnp.broadcast_to(wq_ref[...], (B, H, H))          # [B, H, H]
    wkv = jnp.broadcast_to(wkv_ref[...], (B, H, 2 * H))    # [B, H, 2H]

    # Q projection, with the 1/sqrt(hn) softmax scale folded in once.
    q = (jnp.einsum('bsh,bho->bso', hs, wq, preferred_element_type=f32)
         + bq_ref[...]) * SCALE                            # [B, SQ, H]

    # Fused KV projection; as in torch, the last dim is split in half: K first, V second.
    kv = jnp.einsum('bsh,bho->bso', es, wkv, preferred_element_type=f32) + bkv_ref[...]
    k = kv[..., :H]                                        # [B, SK, H]
    v = kv[..., H:]                                        # [B, SK, H]

    out = None
    for h in range(NP):                    # NP=4, fully unrolled; each step batched over B
        sl = slice(h * HN, (h + 1) * HN)   # static lane slice for head h
        qh = q[..., sl]                    # [B, SQ, HN]
        kh = k[..., sl]                    # [B, SK, HN]
        vh = v[..., sl]                    # [B, SK, HN]

        # scores, mask, numerically-stable softmax
        s = jnp.einsum('bqd,bkd->bqk', qh, kh, preferred_element_type=f32)   # [B, SQ, SK]
        s = s * mask + neg_bias
        s = s - jnp.max(s, axis=-1, keepdims=True)
        p = jnp.exp(s)
        p = p * pl.reciprocal(jnp.sum(p, axis=-1, keepdims=True), approx=False)

        ctx = jnp.einsum('bqk,bkd->bqd', p, vh, preferred_element_type=f32)  # [B, SQ, HN]

        # Fold the head merge into the output projection: accumulate
        # ctx_h @ Wd[h*HN:(h+1)*HN, :] instead of concatenating heads (no lane shuffle).
        wd_h = jnp.broadcast_to(wd_ref[sl, :], (B, HN, H))                   # [B, HN, H]
        contrib = jnp.einsum('bqd,bdo->bqo', ctx, wd_h, preferred_element_type=f32)
        out = contrib if out is None else out + contrib

    out_ref[...] = (out + bd_ref[...]).astype(out_ref.dtype)


def parallel_cross_attention(hidden_states, encoder_states, cross_mask, params):
    """hidden_states [B,SQ,H], encoder_states [B,SK,H], cross_mask [B,1,SQ,SK] -> [B,SQ,H]."""
    wq_t, bq, wkv_t, bkv, wd_t, bd = params
    mask3 = cross_mask.reshape(B, SQ, SK)   # squeeze the singleton head dim (layout hygiene)

    # Single invocation, no grid: all operands are tiny and live whole-array in VMEM.
    # (On v7x a parallel batch grid could use the 2nd TensorCore, but at sub-microsecond
    #  per-batch work the grid-step overhead outweighs it; collapsed grid is the default.)
    return pl.pallas_call(
        _cross_attention_kernel,
        out_shape=jax.ShapeDtypeStruct((B, SQ, H), jnp.float32),
    )(hidden_states, encoder_states, mask3, wq_t, bq, wkv_t, bkv, wd_t, bd)


def reference(hidden_states, encoder_states, cross_mask, params):
    """Pure-JAX reference mirroring the PyTorch forward (eval mode)."""
    wq_t, bq, wkv_t, bkv, wd_t, bd = params
    q = hidden_states @ wq_t + bq[0]                       # [B,SQ,H]
    kv = encoder_states @ wkv_t + bkv[0]                   # [B,SK,2H]
    k, v = kv[..., :H], kv[..., H:]

    def to_heads(x, s):
        return x.reshape(B, s, NP, HN).transpose(0, 2, 1, 3)   # [B,NP,s,HN]

    qh, kh, vh = to_heads(q, SQ), to_heads(k, SK), to_heads(v, SK)
    scores = jnp.einsum("bnqd,bnkd->bnqk", qh, kh) / math.sqrt(HN)
    scores = scores * cross_mask - 10000.0 * (1.0 - cross_mask)
    probs = jax.nn.softmax(scores, axis=-1)
    ctx = jnp.einsum("bnqk,bnkd->bnqd", probs, vh)
    ctx = ctx.transpose(0, 2, 1, 3).reshape(B, SQ, H)
    return ctx @ wd_t + bd[0]


if __name__ == "__main__":
    key = jax.random.PRNGKey(0)
    ks = jax.random.split(key, 8)

    # deterministic parameter init (weights ~ N(0, 0.02); small random biases to
    # exercise the bias paths)
    wq = 0.02 * jax.random.normal(ks[0], (H, H), jnp.float32)        # torch Linear weight [out,in]
    wkv = 0.02 * jax.random.normal(ks[1], (2 * H, H), jnp.float32)
    wd = 0.02 * jax.random.normal(ks[2], (H, H), jnp.float32)
    bq = 0.02 * jax.random.normal(ks[6], (1, H), jnp.float32)
    bkv = 0.02 * jax.random.normal(ks[7], (1, 2 * H), jnp.float32)
    bd = jnp.zeros((1, H), jnp.float32)
    params = (wq.T, bq, wkv.T, bkv, wd.T, bd)                        # kernel uses [in,out] layout

    hidden_states = jax.random.normal(ks[3], (B, SQ, H), jnp.float32)
    encoder_states = jax.random.normal(ks[4], (B, SK, H), jnp.float32)
    cross_mask = (jax.random.uniform(ks[5], (B, 1, SQ, SK)) > 0.3).astype(jnp.float32)

    out = parallel_cross_attention(hidden_states, encoder_states, cross_mask, params)
    out = jax.block_until_ready(out)

    ref = reference(hidden_states, encoder_states, cross_mask, params)
    assert out.shape == (B, SQ, H)
    assert jnp.allclose(out, ref, atol=1e-4, rtol=1e-4), "Pallas output mismatch vs reference"

    print("KERNEL_OK")
</pallas_src>

<mosaic_0001>
module attributes {stable_mosaic.version = 11 : i64} {
  func.func @_cross_attention_kernel(%arg0: memref<2x8x32xf32, #tpu.memory_space<vmem>>, %arg1: memref<2x8x32xf32, #tpu.memory_space<vmem>>, %arg2: memref<2x8x8xf32, #tpu.memory_space<vmem>>, %arg3: memref<32x32xf32, #tpu.memory_space<vmem>>, %arg4: memref<1x32xf32, #tpu.memory_space<vmem>>, %arg5: memref<32x64xf32, #tpu.memory_space<vmem>>, %arg6: memref<1x64xf32, #tpu.memory_space<vmem>>, %arg7: memref<32x32xf32, #tpu.memory_space<vmem>>, %arg8: memref<1x32xf32, #tpu.memory_space<vmem>>, %arg9: memref<2x8x32xf32, #tpu.memory_space<vmem>>) attributes {dimension_semantics = [], scalar_prefetch = 0 : i64, scratch_operands = 0 : i64, tpu.core_type = #tpu.core_type<tc>} {
    %c0 = arith.constant 0 : index
    %c0_0 = arith.constant 0 : index
    %c0_1 = arith.constant 0 : index
    %0 = vector.load %arg0[%c0, %c0_0, %c0_1] : memref<2x8x32xf32, #tpu.memory_space<vmem>>, vector<2x8x32xf32>
    %c0_2 = arith.constant 0 : index
    %c0_3 = arith.constant 0 : index
    %c0_4 = arith.constant 0 : index
    %1 = vector.load %arg1[%c0_2, %c0_3, %c0_4] : memref<2x8x32xf32, #tpu.memory_space<vmem>>, vector<2x8x32xf32>
    %c0_5 = arith.constant 0 : index
    %c0_6 = arith.constant 0 : index
    %c0_7 = arith.constant 0 : index
    %2 = vector.load %arg2[%c0_5, %c0_6, %c0_7] : memref<2x8x8xf32, #tpu.memory_space<vmem>>, vector<2x8x8xf32>
    %cst = arith.constant 1.000000e+00 : f32
    %3 = vector.broadcast %cst : f32 to vector<2x8x8xf32>
    %4 = arith.subf %3, %2 : vector<2x8x8xf32>
    %cst_8 = arith.constant -1.000000e+04 : f32
    %5 = vector.broadcast %cst_8 : f32 to vector<2x8x8xf32>
    %6 = arith.mulf %5, %4 : vector<2x8x8xf32>
    %c0_9 = arith.constant 0 : index
    %c0_10 = arith.constant 0 : index
    %7 = vector.load %arg3[%c0_9, %c0_10] : memref<32x32xf32, #tpu.memory_space<vmem>>, vector<32x32xf32>
    %8 = vector.shape_cast %7 : vector<32x32xf32> to vector<1x32x32xf32>
    %9 = vector.broadcast %8 : vector<1x32x32xf32> to vector<2x32x32xf32>
    %c0_11 = arith.constant 0 : index
    %c0_12 = arith.constant 0 : index
    %10 = vector.load %arg5[%c0_11, %c0_12] : memref<32x64xf32, #tpu.memory_space<vmem>>, vector<32x64xf32>
    %11 = vector.shape_cast %10 : vector<32x64xf32> to vector<1x32x64xf32>
    %12 = vector.broadcast %11 : vector<1x32x64xf32> to vector<2x32x64xf32>
    "tpu.trace_start"() <{level = 10 : i32, message = "bsh,bho->bso"}> : () -> ()
    %cst_13 = arith.constant dense<0.000000e+00> : vector<2x8x32xf32>
    %13 = tpu.matmul %0, %9, %cst_13 {dimension_numbers = #tpu.dot_dimension_numbers<[2], [1], [1], [2], [0, 0, 0, 1, 1, 2], [0], [0]>} : vector<2x8x32xf32>, vector<2x32x32xf32>, vector<2x8x32xf32> -> vector<2x8x32xf32>
    "tpu.trace_stop"() : () -> ()
    %c0_14 = arith.constant 0 : index
    %c0_15 = arith.constant 0 : index
    %14 = vector.load %arg4[%c0_14, %c0_15] : memref<1x32xf32, #tpu.memory_space<vmem>>, vector<1x32xf32>
    %15 = vector.shape_cast %14 : vector<1x32xf32> to vector<1x1x32xf32>
    %16 = vector.broadcast %15 : vector<1x1x32xf32> to vector<2x8x32xf32>
    %17 = arith.addf %13, %16 : vector<2x8x32xf32>
    %cst_16 = arith.constant 0.353553385 : f32
    %18 = vector.broadcast %cst_16 : f32 to vector<2x8x32xf32>
    %19 = arith.mulf %17, %18 : vector<2x8x32xf32>
    "tpu.trace_start"() <{level = 10 : i32, message = "bsh,bho->bso"}> : () -> ()
    %cst_17 = arith.constant dense<0.000000e+00> : vector<2x8x64xf32>
    %20 = tpu.matmul %1, %12, %cst_17 {dimension_numbers = #tpu.dot_dimension_numbers<[2], [1], [1], [2], [0, 0, 0, 1, 1, 2], [0], [0]>} : vector<2x8x32xf32>, vector<2x32x64xf32>, vector<2x8x64xf32> -> vector<2x8x64xf32>
    "tpu.trace_stop"() : () -> ()
    %c0_18 = arith.constant 0 : index
    %c0_19 = arith.constant 0 : index
    %21 = vector.load %arg6[%c0_18, %c0_19] : memref<1x64xf32, #tpu.memory_space<vmem>>, vector<1x64xf32>
    %22 = vector.shape_cast %21 : vector<1x64xf32> to vector<1x1x64xf32>
    %23 = vector.broadcast %22 : vector<1x1x64xf32> to vector<2x8x64xf32>
    %24 = arith.addf %20, %23 : vector<2x8x64xf32>
    %25 = vector.extract_strided_slice %24 {offsets = [0, 0, 0], sizes = [2, 8, 32], strides = [1, 1, 1]} : vector<2x8x64xf32> to vector<2x8x32xf32>
    %26 = vector.extract_strided_slice %24 {offsets = [0, 0, 32], sizes = [2, 8, 32], strides = [1, 1, 1]} : vector<2x8x64xf32> to vector<2x8x32xf32>
    %27 = vector.extract_strided_slice %19 {offsets = [0, 0, 0], sizes = [2, 8, 8], strides = [1, 1, 1]} : vector<2x8x32xf32> to vector<2x8x8xf32>
    %28 = vector.extract_strided_slice %25 {offsets = [0, 0, 0], sizes = [2, 8, 8], strides = [1, 1, 1]} : vector<2x8x32xf32> to vector<2x8x8xf32>
    %29 = vector.extract_strided_slice %26 {offsets = [0, 0, 0], sizes = [2, 8, 8], strides = [1, 1, 1]} : vector<2x8x32xf32> to vector<2x8x8xf32>
    "tpu.trace_start"() <{level = 10 : i32, message = "bqd,bkd->bqk"}> : () -> ()
    %cst_20 = arith.constant dense<0.000000e+00> : vector<2x8x8xf32>
    %30 = tpu.matmul %27, %28, %cst_20 {dimension_numbers = #tpu.dot_dimension_numbers<[2], [2], [1], [1], [0, 0, 0, 1, 1, 1], [0], [0]>} : vector<2x8x8xf32>, vector<2x8x8xf32>, vector<2x8x8xf32> -> vector<2x8x8xf32>
    "tpu.trace_stop"() : () -> ()
    %31 = arith.mulf %30, %2 : vector<2x8x8xf32>
    %32 = arith.addf %31, %6 : vector<2x8x8xf32>
    %cst_21 = arith.constant dense<0xFF800000> : vector<2x8xf32>
    %33 = vector.multi_reduction <maximumf>, %32, %cst_21 [2] : vector<2x8x8xf32> to vector<2x8xf32>
    %34 = vector.shape_cast %33 : vector<2x8xf32> to vector<2x8x1xf32>
    %35 = vector.broadcast %34 : vector<2x8x1xf32> to vector<2x8x8xf32>
    %36 = arith.subf %32, %35 : vector<2x8x8xf32>
    %37 = math.exp %36 : vector<2x8x8xf32>
    %cst_22 = arith.constant dense<0.000000e+00> : vector<2x8xf32>
    %38 = vector.multi_reduction <add>, %37, %cst_22 [2] : vector<2x8x8xf32> to vector<2x8xf32>
    %39 = vector.shape_cast %38 : vector<2x8xf32> to vector<2x8x1xf32>
    %40 = tpu.reciprocal %39 : vector<2x8x1xf32> -> vector<2x8x1xf32>
    %41 = vector.broadcast %40 : vector<2x8x1xf32> to vector<2x8x8xf32>
    %42 = arith.mulf %37, %41 : vector<2x8x8xf32>
    "tpu.trace_start"() <{level = 10 : i32, message = "bqk,bkd->bqd"}> : () -> ()
    %cst_23 = arith.constant dense<0.000000e+00> : vector<2x8x8xf32>
    %43 = tpu.matmul %42, %29, %cst_23 {dimension_numbers = #tpu.dot_dimension_numbers<[2], [1], [1], [2], [0, 0, 0, 1, 1, 2], [0], [0]>} : vector<2x8x8xf32>, vector<2x8x8xf32>, vector<2x8x8xf32> -> vector<2x8x8xf32>
    "tpu.trace_stop"() : () -> ()
    %c0_24 = arith.constant 0 : index
    %c0_25 = arith.constant 0 : index
    %44 = vector.load %arg7[%c0_24, %c0_25] : memref<32x32xf32, #tpu.memory_space<vmem>>, vector<8x32xf32>
    %45 = vector.shape_cast %44 : vector<8x32xf32> to vector<1x8x32xf32>
    %46 = vector.broadcast %45 : vector<1x8x32xf32> to vector<2x8x32xf32>
    "tpu.trace_start"() <{level = 10 : i32, message = "bqd,bdo->bqo"}> : () -> ()
    %cst_26 = arith.constant dense<0.000000e+00> : vector<2x8x32xf32>
    %47 = tpu.matmul %43, %46, %cst_26 {dimension_numbers = #tpu.dot_dimension_numbers<[2], [1], [1], [2], [0, 0, 0, 1, 1, 2], [0], [0]>} : vector<2x8x8xf32>, vector<2x8x32xf32>, vector<2x8x32xf32> -> vector<2x8x32xf32>
    "tpu.trace_stop"() : () -> ()
    %48 = vector.extract_strided_slice %19 {offsets = [0, 0, 8], sizes = [2, 8, 8], strides = [1, 1, 1]} : vector<2x8x32xf32> to vector<2x8x8xf32>
    %49 = vector.extract_strided_slice %25 {offsets = [0, 0, 8], sizes = [2, 8, 8], strides = [1, 1, 1]} : vector<2x8x32xf32> to vector<2x8x8xf32>
    %50 = vector.extract_strided_slice %26 {offsets = [0, 0, 8], sizes = [2, 8, 8], strides = [1, 1, 1]} : vector<2x8x32xf32> to vector<2x8x8xf32>
    "tpu.trace_start"() <{level = 10 : i32, message = "bqd,bkd->bqk"}> : () -> ()
    %cst_27 = arith.constant dense<0.000000e+00> : vector<2x8x8xf32>
    %51 = tpu.matmul %48, %49, %cst_27 {dimension_numbers = #tpu.dot_dimension_numbers<[2], [2], [1], [1], [0, 0, 0, 1, 1, 1], [0], [0]>} : vector<2x8x8xf32>, vector<2x8x8xf32>, vector<2x8x8xf32> -> vector<2x8x8xf32>
    "tpu.trace_stop"() : () -> ()
    %52 = arith.mulf %51, %2 : vector<2x8x8xf32>
    %53 = arith.addf %52, %6 : vector<2x8x8xf32>
    %cst_28 = arith.constant dense<0xFF800000> : vector<2x8xf32>
    %54 = vector.multi_reduction <maximumf>, %53, %cst_28 [2] : vector<2x8x8xf32> to vector<2x8xf32>
    %55 = vector.shape_cast %54 : vector<2x8xf32> to vector<2x8x1xf32>
    %56 = vector.broadcast %55 : vector<2x8x1xf32> to vector<2x8x8xf32>
    %57 = arith.subf %53, %56 : vector<2x8x8xf32>
    %58 = math.exp %57 : vector<2x8x8xf32>
    %cst_29 = arith.constant dense<0.000000e+00> : vector<2x8xf32>
    %59 = vector.multi_reduction <add>, %58, %cst_29 [2] : vector<2x8x8xf32> to vector<2x8xf32>
    %60 = vector.shape_cast %59 : vector<2x8xf32> to vector<2x8x1xf32>
    %61 = tpu.reciprocal %60 : vector<2x8x1xf32> -> vector<2x8x1xf32>
    %62 = vector.broadcast %61 : vector<2x8x1xf32> to vector<2x8x8xf32>
    %63 = arith.mulf %58, %62 : vector<2x8x8xf32>
    "tpu.trace_start"() <{level = 10 : i32, message = "bqk,bkd->bqd"}> : () -> ()
    %cst_30 = arith.constant dense<0.000000e+00> : vector<2x8x8xf32>
    %64 = tpu.matmul %63, %50, %cst_30 {dimension_numbers = #tpu.dot_dimension_numbers<[2], [1], [1], [2], [0, 0, 0, 1, 1, 2], [0], [0]>} : vector<2x8x8xf32>, vector<2x8x8xf32>, vector<2x8x8xf32> -> vector<2x8x8xf32>
    "tpu.trace_stop"() : () -> ()
    %c8 = arith.constant 8 : index
    %c0_31 = arith.constant 0 : index
    %65 = vector.load %arg7[%c8, %c0_31] : memref<32x32xf32, #tpu.memory_space<vmem>>, vector<8x32xf32>
    %66 = vector.shape_cast %65 : vector<8x32xf32> to vector<1x8x32xf32>
    %67 = vector.broadcast %66 : vector<1x8x32xf32> to vector<2x8x32xf32>
    "tpu.trace_start"() <{level = 10 : i32, message = "bqd,bdo->bqo"}> : () -> ()
    %cst_32 = arith.constant dense<0.000000e+00> : vector<2x8x32xf32>
    %68 = tpu.matmul %64, %67, %cst_32 {dimension_numbers = #tpu.dot_dimension_numbers<[2], [1], [1], [2], [0, 0, 0, 1, 1, 2], [0], [0]>} : vector<2x8x8xf32>, vector<2x8x32xf32>, vector<2x8x32xf32> -> vector<2x8x32xf32>
    "tpu.trace_stop"() : () -> ()
    %69 = arith.addf %47, %68 : vector<2x8x32xf32>
    %70 = vector.extract_strided_slice %19 {offsets = [0, 0, 16], sizes = [2, 8, 8], strides = [1, 1, 1]} : vector<2x8x32xf32> to vector<2x8x8xf32>
    %71 = vector.extract_strided_slice %25 {offsets = [0, 0, 16], sizes = [2, 8, 8], strides = [1, 1, 1]} : vector<2x8x32xf32> to vector<2x8x8xf32>
    %72 = vector.extract_strided_slice %26 {offsets = [0, 0, 16], sizes = [2, 8, 8], strides = [1, 1, 1]} : vector<2x8x32xf32> to vector<2x8x8xf32>
    "tpu.trace_start"() <{level = 10 : i32, message = "bqd,bkd->bqk"}> : () -> ()
    %cst_33 = arith.constant dense<0.000000e+00> : vector<2x8x8xf32>
    %73 = tpu.matmul %70, %71, %cst_33 {dimension_numbers = #tpu.dot_dimension_numbers<[2], [2], [1], [1], [0, 0, 0, 1, 1, 1], [0], [0]>} : vector<2x8x8xf32>, vector<2x8x8xf32>, vector<2x8x8xf32> -> vector<2x8x8xf32>
    "tpu.trace_stop"() : () -> ()
    %74 = arith.mulf %73, %2 : vector<2x8x8xf32>
    %75 = arith.addf %74, %6 : vector<2x8x8xf32>
    %cst_34 = arith.constant dense<0xFF800000> : vector<2x8xf32>
    %76 = vector.multi_reduction <maximumf>, %75, %cst_34 [2] : vector<2x8x8xf32> to vector<2x8xf32>
    %77 = vector.shape_cast %76 : vector<2x8xf32> to vector<2x8x1xf32>
    %78 = vector.broadcast %77 : vector<2x8x1xf32> to vector<2x8x8xf32>
    %79 = arith.subf %75, %78 : vector<2x8x8xf32>
    %80 = math.exp %79 : vector<2x8x8xf32>
    %cst_35 = arith.constant dense<0.000000e+00> : vector<2x8xf32>
    %81 = vector.multi_reduction <add>, %80, %cst_35 [2] : vector<2x8x8xf32> to vector<2x8xf32>
    %82 = vector.shape_cast %81 : vector<2x8xf32> to vector<2x8x1xf32>
    %83 = tpu.reciprocal %82 : vector<2x8x1xf32> -> vector<2x8x1xf32>
    %84 = vector.broadcast %83 : vector<2x8x1xf32> to vector<2x8x8xf32>
    %85 = arith.mulf %80, %84 : vector<2x8x8xf32>
    "tpu.trace_start"() <{level = 10 : i32, message = "bqk,bkd->bqd"}> : () -> ()
    %cst_36 = arith.constant dense<0.000000e+00> : vector<2x8x8xf32>
    %86 = tpu.matmul %85, %72, %cst_36 {dimension_numbers = #tpu.dot_dimension_numbers<[2], [1], [1], [2], [0, 0, 0, 1, 1, 2], [0], [0]>} : vector<2x8x8xf32>, vector<2x8x8xf32>, vector<2x8x8xf32> -> vector<2x8x8xf32>
    "tpu.trace_stop"() : () -> ()
    %c16 = arith.constant 16 : index
    %c0_37 = arith.constant 0 : index
    %87 = vector.load %arg7[%c16, %c0_37] : memref<32x32xf32, #tpu.memory_space<vmem>>, vector<8x32xf32>
    %88 = vector.shape_cast %87 : vector<8x32xf32> to vector<1x8x32xf32>
    %89 = vector.broadcast %88 : vector<1x8x32xf32> to vector<2x8x32xf32>
    "tpu.trace_start"() <{level = 10 : i32, message = "bqd,bdo->bqo"}> : () -> ()
    %cst_38 = arith.constant dense<0.000000e+00> : vector<2x8x32xf32>
    %90 = tpu.matmul %86, %89, %cst_38 {dimension_numbers = #tpu.dot_dimension_numbers<[2], [1], [1], [2], [0, 0, 0, 1, 1, 2], [0], [0]>} : vector<2x8x8xf32>, vector<2x8x32xf32>, vector<2x8x32xf32> -> vector<2x8x32xf32>
    "tpu.trace_stop"() : () -> ()
    %91 = arith.addf %69, %90 : vector<2x8x32xf32>
    %92 = vector.extract_strided_slice %19 {offsets = [0, 0, 24], sizes = [2, 8, 8], strides = [1, 1, 1]} : vector<2x8x32xf32> to vector<2x8x8xf32>
    %93 = vector.extract_strided_slice %25 {offsets = [0, 0, 24], sizes = [2, 8, 8], strides = [1, 1, 1]} : vector<2x8x32xf32> to vector<2x8x8xf32>
    %94 = vector.extract_strided_slice %26 {offsets = [0, 0, 24], sizes = [2, 8, 8], strides = [1, 1, 1]} : vector<2x8x32xf32> to vector<2x8x8xf32>
    "tpu.trace_start"() <{level = 10 : i32, message = "bqd,bkd->bqk"}> : () -> ()
    %cst_39 = arith.constant dense<0.000000e+00> : vector<2x8x8xf32>
    %95 = tpu.matmul %92, %93, %cst_39 {dimension_numbers = #tpu.dot_dimension_numbers<[2], [2], [1], [1], [0, 0, 0, 1, 1, 1], [0], [0]>} : vector<2x8x8xf32>, vector<2x8x8xf32>, vector<2x8x8xf32> -> vector<2x8x8xf32>
    "tpu.trace_stop"() : () -> ()
    %96 = arith.mulf %95, %2 : vector<2x8x8xf32>
    %97 = arith.addf %96, %6 : vector<2x8x8xf32>
    %cst_40 = arith.constant dense<0xFF800000> : vector<2x8xf32>
    %98 = vector.multi_reduction <maximumf>, %97, %cst_40 [2] : vector<2x8x8xf32> to vector<2x8xf32>
    %99 = vector.shape_cast %98 : vector<2x8xf32> to vector<2x8x1xf32>
    %100 = vector.broadcast %99 : vector<2x8x1xf32> to vector<2x8x8xf32>
    %101 = arith.subf %97, %100 : vector<2x8x8xf32>
    %102 = math.exp %101 : vector<2x8x8xf32>
    %cst_41 = arith.constant dense<0.000000e+00> : vector<2x8xf32>
    %103 = vector.multi_reduction <add>, %102, %cst_41 [2] : vector<2x8x8xf32> to vector<2x8xf32>
    %104 = vector.shape_cast %103 : vector<2x8xf32> to vector<2x8x1xf32>
    %105 = tpu.reciprocal %104 : vector<2x8x1xf32> -> vector<2x8x1xf32>
    %106 = vector.broadcast %105 : vector<2x8x1xf32> to vector<2x8x8xf32>
    %107 = arith.mulf %102, %106 : vector<2x8x8xf32>
    "tpu.trace_start"() <{level = 10 : i32, message = "bqk,bkd->bqd"}> : () -> ()
    %cst_42 = arith.constant dense<0.000000e+00> : vector<2x8x8xf32>
    %108 = tpu.matmul %107, %94, %cst_42 {dimension_numbers = #tpu.dot_dimension_numbers<[2], [1], [1], [2], [0, 0, 0, 1, 1, 2], [0], [0]>} : vector<2x8x8xf32>, vector<2x8x8xf32>, vector<2x8x8xf32> -> vector<2x8x8xf32>
    "tpu.trace_stop"() : () -> ()
    %c24 = arith.constant 24 : index
    %c0_43 = arith.constant 0 : index
    %109 = vector.load %arg7[%c24, %c0_43] : memref<32x32xf32, #tpu.memory_space<vmem>>, vector<8x32xf32>
    %110 = vector.shape_cast %109 : vector<8x32xf32> to vector<1x8x32xf32>
    %111 = vector.broadcast %110 : vector<1x8x32xf32> to vector<2x8x32xf32>
    "tpu.trace_start"() <{level = 10 : i32, message = "bqd,bdo->bqo"}> : () -> ()
    %cst_44 = arith.constant dense<0.000000e+00> : vector<2x8x32xf32>
    %112 = tpu.matmul %108, %111, %cst_44 {dimension_numbers = #tpu.dot_dimension_numbers<[2], [1], [1], [2], [0, 0, 0, 1, 1, 2], [0], [0]>} : vector<2x8x8xf32>, vector<2x8x32xf32>, vector<2x8x32xf32> -> vector<2x8x32xf32>
    "tpu.trace_stop"() : () -> ()
    %113 = arith.addf %91, %112 : vector<2x8x32xf32>
    %c0_45 = arith.constant 0 : index
    %c0_46 = arith.constant 0 : index
    %114 = vector.load %arg8[%c0_45, %c0_46] : memref<1x32xf32, #tpu.memory_space<vmem>>, vector<1x32xf32>
    %115 = vector.shape_cast %114 : vector<1x32xf32> to vector<1x1x32xf32>
    %116 = vector.broadcast %115 : vector<1x1x32xf32> to vector<2x8x32xf32>
    %117 = arith.addf %113, %116 : vector<2x8x32xf32>
    %c0_47 = arith.constant 0 : index
    %c0_48 = arith.constant 0 : index
    %c0_49 = arith.constant 0 : index
    %118 = vector.load %arg9[%c0_47, %c0_48, %c0_49] : memref<2x8x32xf32, #tpu.memory_space<vmem>>, vector<2x8x32xf32>
    tpu.vector_store %arg9[%c0_47, %c0_48, %c0_49], %117 {strides = array<i32>} : memref<2x8x32xf32, #tpu.memory_space<vmem>>, vector<2x8x32xf32>,
    return
  }
}

</mosaic_0001>

<llo_original>
// kernel: tpu_custom_call.1
$region0: #{tpu_custom_call.1}
  #allocation0 [shape = 'u32[]', space=smem, size = 0x4, offset = 0x4, fixed_abs, tag = 'smem constant byte address 0x4 - core index']
  #allocation1 [shape = 'u32[144,128]{1,0:T(1,128)}', space=vmem, size = 0x12000, scoped, tag = 'internal scratch']
  %s0 = inlined_call_operand.hbm [shape: f32[2,8,32], index: 0, kind: input, shape index: {}]
  %s1 = inlined_call_operand.hbm [shape: f32[2,8,32], index: 1, kind: input, shape index: {}]
  %s2 = inlined_call_operand.hbm [shape: f32[2,8,8], index: 2, kind: input, shape index: {}]
  %s3 = inlined_call_operand.hbm [shape: f32[32,32], index: 3, kind: input, shape index: {}]
  %s4 = inlined_call_operand.vmem [shape: f32[1,32], index: 4, kind: input, shape index: {}]
  %s5 = inlined_call_operand.hbm [shape: f32[32,64], index: 5, kind: input, shape index: {}]
  %s6 = inlined_call_operand.vmem [shape: f32[1,64], index: 6, kind: input, shape index: {}]
  %s7 = inlined_call_operand.hbm [shape: f32[32,32], index: 7, kind: input, shape index: {}]
  %s8 = inlined_call_operand.vmem [shape: f32[1,32], index: 8, kind: input, shape index: {}]
  %s9 = inlined_call_operand.hbm [shape: f32[2,8,32], index: 9, kind: output, shape index: {}]
  %s10 = sld [smem:[#allocation0]]
  $region70: #{tpu_custom_call.1} parent=0
    _
  %s12 = ssub.s32 1, %s10
  %s13 = scalar_select 0, %s12, %s10
  $region1: #{tpu_custom_call.1} parent=0
    #allocation2 [shape = 'u8[8192]{0}', space=vmem, size = 0x2000, scoped, tag = 'input window, operand 0, single buffered']
    #allocation3 [shape = 's32[1]{0}', space=sflag, size = 0x4, scoped, tag = 'scoped memory for tpu_custom_call.1']
    #allocation4 [shape = 's32[1]{0}', space=sflag, size = 0x4, scoped, tag = 'scoped memory for tpu_custom_call.1']
    #allocation5 [shape = 'u8[8192]{0}', space=vmem, size = 0x2000, scoped, tag = 'input window, operand 1, single buffered']
    #allocation6 [shape = 's32[1]{0}', space=sflag, size = 0x4, scoped, tag = 'scoped memory for tpu_custom_call.1']
    #allocation7 [shape = 'u8[8192]{0}', space=vmem, size = 0x2000, scoped, tag = 'input window, operand 2, single buffered']
    #allocation8 [shape = 'u8[16384]{0}', space=vmem, size = 0x4000, scoped, tag = 'input window, operand 3, single buffered']
    #allocation9 [shape = 's32[1]{0}', space=sflag, size = 0x4, scoped, tag = 'scoped memory for tpu_custom_call.1']
    #allocation10 [shape = 'u8[16384]{0}', space=vmem, size = 0x4000, scoped, tag = 'input window, operand 5, single buffered']
    #allocation11 [shape = 'u8[16384]{0}', space=vmem, size = 0x4000, scoped, tag = 'input window, operand 7, single buffered']
    #allocation12 [shape = 's32[1]{0}', space=sflag, size = 0x4, scoped, tag = 'scoped memory for tpu_custom_call.1']
    #allocation13 [shape = 'u8[8192]{0}', space=vmem, size = 0x2000, scoped, tag = 'output window, operand 0, single buffered']
    %14 = vsyncpa [#allocation3], 0
    %15 = vsyncpa [#allocation6], 0
    %16 = vsyncpa [#allocation9], 0
    %17 = vsyncpa [#allocation12], 0
    %18 = vsyncpa [#allocation4], 0
    // Predicated region
    $region2: #{tpu_custom_call.1} parent=1 // pred_check
      _
    $region3: #{tpu_custom_call.1} parent=1 // pred_check_branch
      %20 = sbr.rel (0) target = $region5
    $region4: #{tpu_custom_call.1} parent=1 // pred_region
      %s22 = ssub.s32 256, 256
      %23 = vsyncadd [#allocation3], %s22
      %s24 = sshll.u32 [#allocation2], 4
      %s25 = int_to_ptr.vmem [resolvable:$true] %s24
      %30 = dma.hbm_to_vmem [thread:$0]  %s0, 256, %s25, [#allocation3], 128, 128, 8
    $region5: #{tpu_custom_call.1} parent=1 // pred_fallthru
      _
    // Predicated region
    $region6: #{tpu_custom_call.1} parent=1 // pred_check
      _
    $region7: #{tpu_custom_call.1} parent=1 // pred_check_branch
      %32 = sbr.rel (0) target = $region9
    $region8: #{tpu_custom_call.1} parent=1 // pred_region
      %s34 = ssub.s32 256, 256
      %35 = vsyncadd [#allocation6], %s34
      %s36 = sshll.u32 [#allocation5], 4
      %s37 = int_to_ptr.vmem [resolvable:$true] %s36
      %42 = dma.hbm_to_vmem [thread:$0]  %s1, 256, %s37, [#allocation6], 128, 128, 8
    $region9: #{tpu_custom_call.1} parent=1 // pred_fallthru
      _
    // Predicated region
    $region10: #{tpu_custom_call.1} parent=1 // pred_check
      _
    $region11: #{tpu_custom_call.1} parent=1 // pred_check_branch
      %44 = sbr.rel (0) target = $region13
    $region12: #{tpu_custom_call.1} parent=1 // pred_region
      %s46 = ssub.s32 256, 256
      %47 = vsyncadd [#allocation6], %s46
      %s48 = sshll.u32 [#allocation7], 4
      %s49 = int_to_ptr.vmem [resolvable:$true] %s48
      %54 = dma.hbm_to_vmem [thread:$0]  %s2, 256, %s49, [#allocation6], 128, 128, 8
    $region13: #{tpu_custom_call.1} parent=1 // pred_fallthru
      _
    // Predicated region
    $region14: #{tpu_custom_call.1} parent=1 // pred_check
      _
    $region15: #{tpu_custom_call.1} parent=1 // pred_check_branch
      %56 = sbr.rel (0) target = $region17
    $region16: #{tpu_custom_call.1} parent=1 // pred_region
      %s58 = ssub.s32 512, 512
      %59 = vsyncadd [#allocation9], %s58
      %s60 = sshll.u32 [#allocation8], 4
      %s61 = int_to_ptr.vmem [resolvable:$true] %s60
      %66 = dma.hbm_to_vmem [thread:$0]  %s3, 512, %s61, [#allocation9], 128, 128, 8
    $region17: #{tpu_custom_call.1} parent=1 // pred_fallthru
      _
    // Predicated region
    $region18: #{tpu_custom_call.1} parent=1 // pred_check
      _
    $region19: #{tpu_custom_call.1} parent=1 // pred_check_branch
      %68 = sbr.rel (0) target = $region21
    $region20: #{tpu_custom_call.1} parent=1 // pred_region
      _
    $region21: #{tpu_custom_call.1} parent=1 // pred_fallthru
      _
    // Predicated region
    $region22: #{tpu_custom_call.1} parent=1 // pred_check
      _
    $region23: #{tpu_custom_call.1} parent=1 // pred_check_branch
      %70 = sbr.rel (0) target = $region25
    $region24: #{tpu_custom_call.1} parent=1 // pred_region
      %s72 = ssub.s32 512, 512
      %73 = vsyncadd [#allocation9], %s72
      %s74 = sshll.u32 [#allocation10], 4
      %s75 = int_to_ptr.vmem [resolvable:$true] %s74
      %80 = dma.hbm_to_vmem [thread:$0]  %s5, 512, %s75, [#allocation9], 128, 128, 8
    $region25: #{tpu_custom_call.1} parent=1 // pred_fallthru
      _
    // Predicated region
    $region26: #{tpu_custom_call.1} parent=1 // pred_check
      _
    $region27: #{tpu_custom_call.1} parent=1 // pred_check_branch
      %82 = sbr.rel (0) target = $region29
    $region28: #{tpu_custom_call.1} parent=1 // pred_region
      _
    $region29: #{tpu_custom_call.1} parent=1 // pred_fallthru
      _
    // Predicated region
    $region30: #{tpu_custom_call.1} parent=1 // pred_check
      _
    $region31: #{tpu_custom_call.1} parent=1 // pred_check_branch
      %84 = sbr.rel (0) target = $region33
    $region32: #{tpu_custom_call.1} parent=1 // pred_region
      %s86 = ssub.s32 512, 512
      %87 = vsyncadd [#allocation12], %s86
      %s88 = sshll.u32 [#allocation11], 4
      %s89 = int_to_ptr.vmem [resolvable:$true] %s88
      %94 = dma.hbm_to_vmem [thread:$0]  %s7, 512, %s89, [#allocation12], 128, 128, 8
    $region33: #{tpu_custom_call.1} parent=1 // pred_fallthru
      _
    // Predicated region
    $region34: #{tpu_custom_call.1} parent=1 // pred_check
      _
    $region35: #{tpu_custom_call.1} parent=1 // pred_check_branch
      %96 = sbr.rel (0) target = $region37
    $region36: #{tpu_custom_call.1} parent=1 // pred_region
      _
    $region37: #{tpu_custom_call.1} parent=1 // pred_fallthru
      _
    // Predicated region
    $region38: #{tpu_custom_call.1} parent=1 // pred_check
      _
    $region39: #{tpu_custom_call.1} parent=1 // pred_check_branch
      %98 = sbr.rel (0) target = $region41
    $region40: #{tpu_custom_call.1} parent=1 // pred_region
      %99 = dma.done [#allocation3], 256
    $region41: #{tpu_custom_call.1} parent=1 // pred_fallthru
      _
    // Predicated region
    $region42: #{tpu_custom_call.1} parent=1 // pred_check
      _
    $region43: #{tpu_custom_call.1} parent=1 // pred_check_branch
      %101 = sbr.rel (0) target = $region45
    $region44: #{tpu_custom_call.1} parent=1 // pred_region
      %102 = dma.done [#allocation6], 256
    $region45: #{tpu_custom_call.1} parent=1 // pred_fallthru
      _
    // Predicated region
    $region46: #{tpu_custom_call.1} parent=1 // pred_check
      _
    $region47: #{tpu_custom_call.1} parent=1 // pred_check_branch
      %104 = sbr.rel (0) target = $region49
    $region48: #{tpu_custom_call.1} parent=1 // pred_region
      %105 = dma.done [#allocation6], 256
    $region49: #{tpu_custom_call.1} parent=1 // pred_fallthru
      _
    // Predicated region
    $region50: #{tpu_custom_call.1} parent=1 // pred_check
      _
    $region51: #{tpu_custom_call.1} parent=1 // pred_check_branch
      %107 = sbr.rel (0) target = $region53
    $region52: #{tpu_custom_call.1} parent=1 // pred_region
      %108 = dma.done [#allocation9], 512
    $region53: #{tpu_custom_call.1} parent=1 // pred_fallthru
      _
    // Predicated region
    $region54: #{tpu_custom_call.1} parent=1 // pred_check
      _
    $region55: #{tpu_custom_call.1} parent=1 // pred_check_branch
      %110 = sbr.rel (0) target = $region57
    $region56: #{tpu_custom_call.1} parent=1 // pred_region
      %111 = dma.done [#allocation9], 512
    $region57: #{tpu_custom_call.1} parent=1 // pred_fallthru
      _
    // Predicated region
    $region58: #{tpu_custom_call.1} parent=1 // pred_check
      _
    $region59: #{tpu_custom_call.1} parent=1 // pred_check_branch
      %113 = sbr.rel (0) target = $region61
    $region60: #{tpu_custom_call.1} parent=1 // pred_region
      %114 = dma.done [#allocation12], 512
    $region61: #{tpu_custom_call.1} parent=1 // pred_fallthru
      _
    %v115 = vld [vmem:[#allocation2] sm:$0xff]
    %v116 = vld [vmem:[#allocation2 + $0x8] sm:$0xff]
    %v117 = vld [vmem:[#allocation5] sm:$0xff]
    %v118 = vld [vmem:[#allocation5 + $0x8] sm:$0xff]
    %v119 = vld [vmem:[#allocation7] sm:$0xff]
    %v120 = vld [vmem:[#allocation7 + $0x8] sm:$0xff]
    %v121 = vsub.f32 1.0, %v119
    %v122 = vsub.f32 1.0, %v120
    %v123 = vmul.f32 %v121, -10000.0
    %v124 = vmul.f32 %v122, -10000.0
    %v125 = vld [vmem:[#allocation8] sm:$0xff]
    %v126 = vld [vmem:[#allocation8 + $0x8] sm:$0xff]
    %v127 = vld [vmem:[#allocation8 + $0x10] sm:$0xff]
    %v128 = vld [vmem:[#allocation8 + $0x18] sm:$0xff]
    %v129 = vld [vmem:[#allocation10] sm:$0xff]
    %v130 = vld [vmem:[#allocation10 + $0x8] sm:$0xff]
    %v131 = vld [vmem:[#allocation10 + $0x10] sm:$0xff]
    %v132 = vld [vmem:[#allocation10 + $0x18] sm:$0xff]
    %v133 = vld [vmem:[%s4] sm:$0x1]
    %v135 = vlaneseq
    %v136 = vshrl.u32 %v135, 7
    %v137 = vsub.s32 0, %v136
    %v138 = vrot.slane %v133, %v137
    %vm140 = vcmask 261120
    %v142 = vsel %vm140, %v115, 0
    %144 = vmatprep.subr.mxu0 0.0
    %145 = vmatpush1.msra.mxu0 %v125
    %146 = vmatprep.subr.mxu0 0.0
    %147 = vmatpush1.msra.mxu0 %v126
    %148 = vmatprep.subr.mxu0 0.0
    %149 = vmatpush1.msra.mxu0 %v127
    %150 = vmatprep.subr.mxu0 0.0
    %151 = vmatpush1.msra.mxu0 %v128
    %152 = vmatprep.subr.mxu0 0.0
    %153 = vmatpush1.msra.mxu0 0.0
    %154 = vmatprep.subr.mxu0 0.0
    %155 = vmatpush1.msra.mxu0 0.0
    %156 = vmatprep.subr.mxu0 0.0
    %157 = vmatpush1.msra.mxu0 0.0
    %158 = vmatprep.subr.mxu0 0.0
    %159 = vmatpush1.msra.mxu0 0.0
    %160 = vmatprep.subr.mxu0 0.0
    %161 = vmatpush1.msra.mxu0 0.0
    %162 = vmatprep.subr.mxu0 0.0
    %163 = vmatpush1.msra.mxu0 0.0
    %164 = vmatprep.subr.mxu0 0.0
    %165 = vmatpush1.msra.mxu0 0.0
    %166 = vmatprep.subr.mxu0 0.0
    %167 = vmatpush1.msra.mxu0 0.0
    %168 = vmatprep.subr.mxu0 0.0
    %169 = vmatpush1.msra.mxu0 0.0
    %170 = vmatprep.subr.mxu0 0.0
    %171 = vmatpush1.msra.mxu0 0.0
    %172 = vmatprep.subr.mxu0 0.0
    %173 = vmatpush1.msra.mxu0 0.0
    %174 = vmatprep.subr.mxu0 0.0
    %175 = vmatpush1.msra.mxu0 0.0
    %176 = vmatprep.subr.mxu0 0.0
    %177 = vmatpush1.msra.mxu0 0.0
    %178 = vmatprep.subr.mxu0 0.0
    %179 = vmatpush1.msra.mxu0 0.0
    %180 = vmatprep.subr.mxu0 0.0
    %181 = vmatpush1.msra.mxu0 0.0
    %182 = vmatprep.subr.mxu0 0.0
    %183 = vmatpush1.msra.mxu0 0.0
    %184 = vmatprep.subr.mxu0 0.0
    %185 = vmatpush1.msra.mxu0 0.0
    %186 = vmatprep.subr.mxu0 0.0
    %187 = vmatpush1.msra.mxu0 0.0
    %188 = vmatprep.subr.mxu0 0.0
    %189 = vmatpush1.msra.mxu0 0.0
    %190 = vmatprep.subr.mxu0 0.0
    %191 = vmatpush1.msra.mxu0 0.0
    %192 = vmatprep.subr.mxu0 0.0
    %193 = vmatpush1.msra.mxu0 0.0
    %194 = vmatprep.subr.mxu0 0.0
    %195 = vmatpush1.msra.mxu0 0.0
    %196 = vmatprep.subr.mxu0 0.0
    %197 = vmatpush1.msra.mxu0 0.0
    %198 = vmatprep.subr.mxu0 0.0
    %199 = vmatpush1.msra.mxu0 0.0
    %200 = vmatprep.subr.mxu0 0.0
    %201 = vmatpush1.msra.mxu0 0.0
    %202 = vmatprep.subr.mxu0 0.0
    %203 = vmatpush1.msra.mxu0 0.0
    %204 = vmatprep.subr.mxu0 0.0
    %205 = vmatpush1.msra.mxu0 0.0
    %206 = vmatprep.subr.mxu0 0.0
    %207 = vmatpush1.msra.mxu0 0.0
    %208 = vmatprep.mubr.f32.mxu0 0.0
    %209 = vmatmul.mubr.f32.gmra.mrb[0].mxu0 %v142
    %v210 = vpop.f32.mrb[0].mxu0
    %v211 = vadd.f32 %v138, %v210
    %v212 = vpop.f32.mrb[0].mxu0
    %213 = vdwg.mxu0
    %v215 = vsel %vm140, %v116, 0
    %217 = vmatprep.subr.mxu0 0.0
    %218 = vmatpush1.msra.mxu0 %v125
    %219 = vmatprep.subr.mxu0 0.0
    %220 = vmatpush1.msra.mxu0 %v126
    %221 = vmatprep.subr.mxu0 0.0
    %222 = vmatpush1.msra.mxu0 %v127
    %223 = vmatprep.subr.mxu0 0.0
    %224 = vmatpush1.msra.mxu0 %v128
    %225 = vmatprep.subr.mxu0 0.0
    %226 = vmatpush1.msra.mxu0 0.0
    %227 = vmatprep.subr.mxu0 0.0
    %228 = vmatpush1.msra.mxu0 0.0
    %229 = vmatprep.subr.mxu0 0.0
    %230 = vmatpush1.msra.mxu0 0.0
    %231 = vmatprep.subr.mxu0 0.0
    %232 = vmatpush1.msra.mxu0 0.0
    %233 = vmatprep.subr.mxu0 0.0
    %234 = vmatpush1.msra.mxu0 0.0
    %235 = vmatprep.subr.mxu0 0.0
    %236 = vmatpush1.msra.mxu0 0.0
    %237 = vmatprep.subr.mxu0 0.0
    %238 = vmatpush1.msra.mxu0 0.0
    %239 = vmatprep.subr.mxu0 0.0
    %240 = vmatpush1.msra.mxu0 0.0
    %241 = vmatprep.subr.mxu0 0.0
    %242 = vmatpush1.msra.mxu0 0.0
    %243 = vmatprep.subr.mxu0 0.0
    %244 = vmatpush1.msra.mxu0 0.0
    %245 = vmatprep.subr.mxu0 0.0
    %246 = vmatpush1.msra.mxu0 0.0
    %247 = vmatprep.subr.mxu0 0.0
    %248 = vmatpush1.msra.mxu0 0.0
    %249 = vmatprep.subr.mxu0 0.0
    %250 = vmatpush1.msra.mxu0 0.0
    %251 = vmatprep.subr.mxu0 0.0
    %252 = vmatpush1.msra.mxu0 0.0
    %253 = vmatprep.subr.mxu0 0.0
    %254 = vmatpush1.msra.mxu0 0.0
    %255 = vmatprep.subr.mxu0 0.0
    %256 = vmatpush1.msra.mxu0 0.0
    %257 = vmatprep.subr.mxu0 0.0
    %258 = vmatpush1.msra.mxu0 0.0
    %259 = vmatprep.subr.mxu0 0.0
    %260 = vmatpush1.msra.mxu0 0.0
    %261 = vmatprep.subr.mxu0 0.0
    %262 = vmatpush1.msra.mxu0 0.0
    %263 = vmatprep.subr.mxu0 0.0
    %264 = vmatpush1.msra.mxu0 0.0
    %265 = vmatprep.subr.mxu0 0.0
    %266 = vmatpush1.msra.mxu0 0.0
    %267 = vmatprep.subr.mxu0 0.0
    %268 = vmatpush1.msra.mxu0 0.0
    %269 = vmatprep.subr.mxu0 0.0
    %270 = vmatpush1.msra.mxu0 0.0
    %271 = vmatprep.subr.mxu0 0.0
    %272 = vmatpush1.msra.mxu0 0.0
    %273 = vmatprep.subr.mxu0 0.0
    %274 = vmatpush1.msra.mxu0 0.0
    %275 = vmatprep.subr.mxu0 0.0
    %276 = vmatpush1.msra.mxu0 0.0
    %277 = vmatprep.subr.mxu0 0.0
    %278 = vmatpush1.msra.mxu0 0.0
    %279 = vmatprep.subr.mxu0 0.0
    %280 = vmatpush1.msra.mxu0 0.0
    %281 = vmatprep.mubr.f32.mxu0 0.0
    %282 = vmatmul.mubr.f32.gmra.mrb[0].mxu0 %v215
    %v283 = vpop.f32.mrb[0].mxu0
    %v284 = vadd.f32 %v138, %v283
    %v285 = vpop.f32.mrb[0].mxu0
    %286 = vdwg.mxu0
    %v287 = vmul.f32 %v211, 0.35355338
    %v288 = vmul.f32 %v284, 0.35355338
    %v289 = vld [vmem:[%s6] sm:$0x1]
    %v291 = vlaneseq
    %v292 = vshrl.u32 %v291, 7
    %v293 = vsub.s32 0, %v292
    %v294 = vrot.slane %v289, %v293
    %v297 = vsel %vm140, %v117, 0
    %299 = vmatprep.subr.mxu0 0.0
    %300 = vmatpush1.msra.mxu0 %v129
    %301 = vmatprep.subr.mxu0 0.0
    %302 = vmatpush1.msra.mxu0 %v130
    %303 = vmatprep.subr.mxu0 0.0
    %304 = vmatpush1.msra.mxu0 %v131
    %305 = vmatprep.subr.mxu0 0.0
    %306 = vmatpush1.msra.mxu0 %v132
    %307 = vmatprep.subr.mxu0 0.0
    %308 = vmatpush1.msra.mxu0 0.0
    %309 = vmatprep.subr.mxu0 0.0
    %310 = vmatpush1.msra.mxu0 0.0
    %311 = vmatprep.subr.mxu0 0.0
    %312 = vmatpush1.msra.mxu0 0.0
    %313 = vmatprep.subr.mxu0 0.0
    %314 = vmatpush1.msra.mxu0 0.0
    %315 = vmatprep.subr.mxu0 0.0
    %316 = vmatpush1.msra.mxu0 0.0
    %317 = vmatprep.subr.mxu0 0.0
    %318 = vmatpush1.msra.mxu0 0.0
    %319 = vmatprep.subr.mxu0 0.0
    %320 = vmatpush1.msra.mxu0 0.0
    %321 = vmatprep.subr.mxu0 0.0
    %322 = vmatpush1.msra.mxu0 0.0
    %323 = vmatprep.subr.mxu0 0.0
    %324 = vmatpush1.msra.mxu0 0.0
    %325 = vmatprep.subr.mxu0 0.0
    %326 = vmatpush1.msra.mxu0 0.0
    %327 = vmatprep.subr.mxu0 0.0
    %328 = vmatpush1.msra.mxu0 0.0
    %329 = vmatprep.subr.mxu0 0.0
    %330 = vmatpush1.msra.mxu0 0.0
    %331 = vmatprep.subr.mxu0 0.0
    %332 = vmatpush1.msra.mxu0 0.0
    %333 = vmatprep.subr.mxu0 0.0
    %334 = vmatpush1.msra.mxu0 0.0
    %335 = vmatprep.subr.mxu0 0.0
    %336 = vmatpush1.msra.mxu0 0.0
    %337 = vmatprep.subr.mxu0 0.0
    %338 = vmatpush1.msra.mxu0 0.0
    %339 = vmatprep.subr.mxu0 0.0
    %340 = vmatpush1.msra.mxu0 0.0
    %341 = vmatprep.subr.mxu0 0.0
    %342 = vmatpush1.msra.mxu0 0.0
    %343 = vmatprep.subr.mxu0 0.0
    %344 = vmatpush1.msra.mxu0 0.0
    %345 = vmatprep.subr.mxu0 0.0
    %346 = vmatpush1.msra.mxu0 0.0
    %347 = vmatprep.subr.mxu0 0.0
    %348 = vmatpush1.msra.mxu0 0.0
    %349 = vmatprep.subr.mxu0 0.0
    %350 = vmatpush1.msra.mxu0 0.0
    %351 = vmatprep.subr.mxu0 0.0
    %352 = vmatpush1.msra.mxu0 0.0
    %353 = vmatprep.subr.mxu0 0.0
    %354 = vmatpush1.msra.mxu0 0.0
    %355 = vmatprep.subr.mxu0 0.0
    %356 = vmatpush1.msra.mxu0 0.0
    %357 = vmatprep.subr.mxu0 0.0
    %358 = vmatpush1.msra.mxu0 0.0
    %359 = vmatprep.subr.mxu0 0.0
    %360 = vmatpush1.msra.mxu0 0.0
    %361 = vmatprep.subr.mxu0 0.0
    %362 = vmatpush1.msra.mxu0 0.0
    %363 = vmatprep.mubr.f32.mxu0 0.0
    %364 = vmatmul.mubr.f32.gmra.mrb[0].mxu0 %v297
    %v365 = vpop.f32.mrb[0].mxu0
    %v366 = vadd.f32 %v294, %v365
    %v367 = vpop.f32.mrb[0].mxu0
    %368 = vdwg.mxu0
    %v370 = vsel %vm140, %v118, 0
    %372 = vmatprep.subr.mxu0 0.0
    %373 = vmatpush1.msra.mxu0 %v129
    %374 = vmatprep.subr.mxu0 0.0
    %375 = vmatpush1.msra.mxu0 %v130
    %376 = vmatprep.subr.mxu0 0.0
    %377 = vmatpush1.msra.mxu0 %v131
    %378 = vmatprep.subr.mxu0 0.0
    %379 = vmatpush1.msra.mxu0 %v132
    %380 = vmatprep.subr.mxu0 0.0
    %381 = vmatpush1.msra.mxu0 0.0
    %382 = vmatprep.subr.mxu0 0.0
    %383 = vmatpush1.msra.mxu0 0.0
    %384 = vmatprep.subr.mxu0 0.0
    %385 = vmatpush1.msra.mxu0 0.0
    %386 = vmatprep.subr.mxu0 0.0
    %387 = vmatpush1.msra.mxu0 0.0
    %388 = vmatprep.subr.mxu0 0.0
    %389 = vmatpush1.msra.mxu0 0.0
    %390 = vmatprep.subr.mxu0 0.0
    %391 = vmatpush1.msra.mxu0 0.0
    %392 = vmatprep.subr.mxu0 0.0
    %393 = vmatpush1.msra.mxu0 0.0
    %394 = vmatprep.subr.mxu0 0.0
    %395 = vmatpush1.msra.mxu0 0.0
    %396 = vmatprep.subr.mxu0 0.0
    %397 = vmatpush1.msra.mxu0 0.0
    %398 = vmatprep.subr.mxu0 0.0
    %399 = vmatpush1.msra.mxu0 0.0
    %400 = vmatprep.subr.mxu0 0.0
    %401 = vmatpush1.msra.mxu0 0.0
    %402 = vmatprep.subr.mxu0 0.0
    %403 = vmatpush1.msra.mxu0 0.0
    %404 = vmatprep.subr.mxu0 0.0
    %405 = vmatpush1.msra.mxu0 0.0
    %406 = vmatprep.subr.mxu0 0.0
    %407 = vmatpush1.msra.mxu0 0.0
    %408 = vmatprep.subr.mxu0 0.0
    %409 = vmatpush1.msra.mxu0 0.0
    %410 = vmatprep.subr.mxu0 0.0
    %411 = vmatpush1.msra.mxu0 0.0
    %412 = vmatprep.subr.mxu0 0.0
    %413 = vmatpush1.msra.mxu0 0.0
    %414 = vmatprep.subr.mxu0 0.0
    %415 = vmatpush1.msra.mxu0 0.0
    %416 = vmatprep.subr.mxu0 0.0
    %417 = vmatpush1.msra.mxu0 0.0
    %418 = vmatprep.subr.mxu0 0.0
    %419 = vmatpush1.msra.mxu0 0.0
    %420 = vmatprep.subr.mxu0 0.0
    %421 = vmatpush1.msra.mxu0 0.0
    %422 = vmatprep.subr.mxu0 0.0
    %423 = vmatpush1.msra.mxu0 0.0
    %424 = vmatprep.subr.mxu0 0.0
    %425 = vmatpush1.msra.mxu0 0.0
    %426 = vmatprep.subr.mxu0 0.0
    %427 = vmatpush1.msra.mxu0 0.0
    %428 = vmatprep.subr.mxu0 0.0
    %429 = vmatpush1.msra.mxu0 0.0
    %430 = vmatprep.subr.mxu0 0.0
    %431 = vmatpush1.msra.mxu0 0.0
    %432 = vmatprep.subr.mxu0 0.0
    %433 = vmatpush1.msra.mxu0 0.0
    %434 = vmatprep.subr.mxu0 0.0
    %435 = vmatpush1.msra.mxu0 0.0
    %436 = vmatprep.mubr.f32.mxu0 0.0
    %437 = vmatmul.mubr.f32.gmra.mrb[0].mxu0 %v370
    %v438 = vpop.f32.mrb[0].mxu0
    %v439 = vadd.f32 %v294, %v438
    %v440 = vpop.f32.mrb[0].mxu0
    %441 = vdwg.mxu0
    %vm442 = vcmask 64512
    %v444 = vsel %vm442, %v287, 0
    %v447 = vsel %vm442, %v366, 0
    %449 = vmatprep.subr.mxu0 0.0
    %450 = vmatpush1.xpose.msra.mxu0 %v447
    %451 = vmatprep.subr.mxu0 0.0
    %452 = vmatpush1.xpose.msra.mxu0 0.0
    %453 = vmatprep.subr.mxu0 0.0
    %454 = vmatpush1.xpose.msra.mxu0 0.0
    %455 = vmatprep.subr.mxu0 0.0
    %456 = vmatpush1.xpose.msra.mxu0 0.0
    %457 = vmatprep.subr.mxu0 0.0
    %458 = vmatpush1.xpose.msra.mxu0 0.0
    %459 = vmatprep.subr.mxu0 0.0
    %460 = vmatpush1.xpose.msra.mxu0 0.0
    %461 = vmatprep.subr.mxu0 0.0
    %462 = vmatpush1.xpose.msra.mxu0 0.0
    %463 = vmatprep.subr.mxu0 0.0
    %464 = vmatpush1.xpose.msra.mxu0 0.0
    %465 = vmatprep.subr.mxu0 0.0
    %466 = vmatpush1.xpose.msra.mxu0 0.0
    %467 = vmatprep.subr.mxu0 0.0
    %468 = vmatpush1.xpose.msra.mxu0 0.0
    %469 = vmatprep.subr.mxu0 0.0
    %470 = vmatpush1.xpose.msra.mxu0 0.0
    %471 = vmatprep.subr.mxu0 0.0
    %472 = vmatpush1.xpose.msra.mxu0 0.0
    %473 = vmatprep.subr.mxu0 0.0
    %474 = vmatpush1.xpose.msra.mxu0 0.0
    %475 = vmatprep.subr.mxu0 0.0
    %476 = vmatpush1.xpose.msra.mxu0 0.0
    %477 = vmatprep.subr.mxu0 0.0
    %478 = vmatpush1.xpose.msra.mxu0 0.0
    %479 = vmatprep.subr.mxu0 0.0
    %480 = vmatpush1.xpose.msra.mxu0 0.0
    %481 = vmatprep.subr.mxu0 0.0
    %482 = vmatpush1.xpose.msra.mxu0 0.0
    %483 = vmatprep.subr.mxu0 0.0
    %484 = vmatpush1.xpose.msra.mxu0 0.0
    %485 = vmatprep.subr.mxu0 0.0
    %486 = vmatpush1.xpose.msra.mxu0 0.0
    %487 = vmatprep.subr.mxu0 0.0
    %488 = vmatpush1.xpose.msra.mxu0 0.0
    %489 = vmatprep.subr.mxu0 0.0
    %490 = vmatpush1.xpose.msra.mxu0 0.0
    %491 = vmatprep.subr.mxu0 0.0
    %492 = vmatpush1.xpose.msra.mxu0 0.0
    %493 = vmatprep.subr.mxu0 0.0
    %494 = vmatpush1.xpose.msra.mxu0 0.0
    %495 = vmatprep.subr.mxu0 0.0
    %496 = vmatpush1.xpose.msra.mxu0 0.0
    %497 = vmatprep.subr.mxu0 0.0
    %498 = vmatpush1.xpose.msra.mxu0 0.0
    %499 = vmatprep.subr.mxu0 0.0
    %500 = vmatpush1.xpose.msra.mxu0 0.0
    %501 = vmatprep.subr.mxu0 0.0
    %502 = vmatpush1.xpose.msra.mxu0 0.0
    %503 = vmatprep.subr.mxu0 0.0
    %504 = vmatpush1.xpose.msra.mxu0 0.0
    %505 = vmatprep.subr.mxu0 0.0
    %506 = vmatpush1.xpose.msra.mxu0 0.0
    %507 = vmatprep.subr.mxu0 0.0
    %508 = vmatpush1.xpose.msra.mxu0 0.0
    %509 = vmatprep.subr.mxu0 0.0
    %510 = vmatpush1.xpose.msra.mxu0 0.0
    %511 = vmatprep.subr.mxu0 0.0
    %512 = vmatpush1.xpose.msra.mxu0 0.0
    %513 = vmatprep.mubr.f32.mxu0 0.0
    %514 = vmatmul.mubr.f32.gmra.mrb[0].mxu0 %v444
    %v515 = vpop.f32.mrb[0].mxu0
    %v516 = vadd.f32 0.0, %v515
    %v517 = vpop.f32.mrb[0].mxu0
    %518 = vdwg.mxu0
    %v520 = vsel %vm442, %v288, 0
    %v523 = vsel %vm442, %v439, 0
    %525 = vmatprep.subr.mxu0 0.0
    %526 = vmatpush1.xpose.msra.mxu0 %v523
    %527 = vmatprep.subr.mxu0 0.0
    %528 = vmatpush1.xpose.msra.mxu0 0.0
    %529 = vmatprep.subr.mxu0 0.0
    %530 = vmatpush1.xpose.msra.mxu0 0.0
    %531 = vmatprep.subr.mxu0 0.0
    %532 = vmatpush1.xpose.msra.mxu0 0.0
    %533 = vmatprep.subr.mxu0 0.0
    %534 = vmatpush1.xpose.msra.mxu0 0.0
    %535 = vmatprep.subr.mxu0 0.0
    %536 = vmatpush1.xpose.msra.mxu0 0.0
    %537 = vmatprep.subr.mxu0 0.0
    %538 = vmatpush1.xpose.msra.mxu0 0.0
    %539 = vmatprep.subr.mxu0 0.0
    %540 = vmatpush1.xpose.msra.mxu0 0.0
    %541 = vmatprep.subr.mxu0 0.0
    %542 = vmatpush1.xpose.msra.mxu0 0.0
    %543 = vmatprep.subr.mxu0 0.0
    %544 = vmatpush1.xpose.msra.mxu0 0.0
    %545 = vmatprep.subr.mxu0 0.0
    %546 = vmatpush1.xpose.msra.mxu0 0.0
    %547 = vmatprep.subr.mxu0 0.0
    %548 = vmatpush1.xpose.msra.mxu0 0.0
    %549 = vmatprep.subr.mxu0 0.0
    %550 = vmatpush1.xpose.msra.mxu0 0.0
    %551 = vmatprep.subr.mxu0 0.0
    %552 = vmatpush1.xpose.msra.mxu0 0.0
    %553 = vmatprep.subr.mxu0 0.0
    %554 = vmatpush1.xpose.msra.mxu0 0.0
    %555 = vmatprep.subr.mxu0 0.0
    %556 = vmatpush1.xpose.msra.mxu0 0.0
    %557 = vmatprep.subr.mxu0 0.0
    %558 = vmatpush1.xpose.msra.mxu0 0.0
    %559 = vmatprep.subr.mxu0 0.0
    %560 = vmatpush1.xpose.msra.mxu0 0.0
    %561 = vmatprep.subr.mxu0 0.0
    %562 = vmatpush1.xpose.msra.mxu0 0.0
    %563 = vmatprep.subr.mxu0 0.0
    %564 = vmatpush1.xpose.msra.mxu0 0.0
    %565 = vmatprep.subr.mxu0 0.0
    %566 = vmatpush1.xpose.msra.mxu0 0.0
    %567 = vmatprep.subr.mxu0 0.0
    %568 = vmatpush1.xpose.msra.mxu0 0.0
    %569 = vmatprep.subr.mxu0 0.0
    %570 = vmatpush1.xpose.msra.mxu0 0.0
    %571 = vmatprep.subr.mxu0 0.0
    %572 = vmatpush1.xpose.msra.mxu0 0.0
    %573 = vmatprep.subr.mxu0 0.0
    %574 = vmatpush1.xpose.msra.mxu0 0.0
    %575 = vmatprep.subr.mxu0 0.0
    %576 = vmatpush1.xpose.msra.mxu0 0.0
    %577 = vmatprep.subr.mxu0 0.0
    %578 = vmatpush1.xpose.msra.mxu0 0.0
    %579 = vmatprep.subr.mxu0 0.0
    %580 = vmatpush1.xpose.msra.mxu0 0.0
    %581 = vmatprep.subr.mxu0 0.0
    %582 = vmatpush1.xpose.msra.mxu0 0.0
    %583 = vmatprep.subr.mxu0 0.0
    %584 = vmatpush1.xpose.msra.mxu0 0.0
    %585 = vmatprep.subr.mxu0 0.0
    %586 = vmatpush1.xpose.msra.mxu0 0.0
    %587 = vmatprep.subr.mxu0 0.0
    %588 = vmatpush1.xpose.msra.mxu0 0.0
    %589 = vmatprep.mubr.f32.mxu0 0.0
    %590 = vmatmul.mubr.f32.gmra.mrb[0].mxu0 %v520
    %v591 = vpop.f32.mrb[0].mxu0
    %v592 = vadd.f32 0.0, %v591
    %v593 = vpop.f32.mrb[0].mxu0
    %594 = vdwg.mxu0
    %v595 = vmul.f32 %v516, %v119
    %v596 = vmul.f32 %v592, %v120
    %v597 = vadd.f32 %v595, %v123
    %v598 = vadd.f32 %v596, %v124
    %v599 = vsel %vm442, %v597, -inf
    %600 = vmax.xlane.f32.xlu0 %v599
    %v601 = vpop.xlane.xlu0 %600
    %v602 = vsel %vm442, %v598, -inf
    %603 = vmax.xlane.f32.xlu0 %v602
    %v604 = vpop.xlane.xlu0 %603
    %v605 = vsub.f32 %v597, %v601
    %v606 = vsub.f32 %v598, %v604
    %v607 = vmul.f32 %v605, 1.442695
    %v608 = vpow.pop %v607
    %v609 = vmul.f32 %v606, 1.442695
    %v610 = vpow.pop %v609
    %v611 = vsel %vm442, %v608, 0.0
    %612 = vadd.xlane.f32.xlu0 %v611
    %v613 = vpop.xlane.xlu0 %612
    %v614 = vsel %vm442, %v610, 0.0
    %615 = vadd.xlane.f32.xlu0 %v614
    %v616 = vpop.xlane.xlu0 %615
    %v617 = vrcp.pop %v613
    %v618 = vrcp.pop %v616
    %v619 = vmul.f32 %v608, %v617
    %v620 = vmul.f32 %v610, %v618
    %621 = vrot.lane.b32.xlu0 %v366, 96
    %v622 = vpop.permute.xlu0 %621
    %v625 = vsel %vm442, %v619, 0
    %627 = vmatprep.subr.mxu0 0.0
    %628 = vmatpush1.msra.mxu0 %v622
    %629 = vmatprep.subr.mxu0 0.0
    %630 = vmatpush1.msra.mxu0 0.0
    %631 = vmatprep.subr.mxu0 0.0
    %632 = vmatpush1.msra.mxu0 0.0
    %633 = vmatprep.subr.mxu0 0.0
    %634 = vmatpush1.msra.mxu0 0.0
    %635 = vmatprep.subr.mxu0 0.0
    %636 = vmatpush1.msra.mxu0 0.0
    %637 = vmatprep.subr.mxu0 0.0
    %638 = vmatpush1.msra.mxu0 0.0
    %639 = vmatprep.subr.mxu0 0.0
    %640 = vmatpush1.msra.mxu0 0.0
    %641 = vmatprep.subr.mxu0 0.0
    %642 = vmatpush1.msra.mxu0 0.0
    %643 = vmatprep.subr.mxu0 0.0
    %644 = vmatpush1.msra.mxu0 0.0
    %645 = vmatprep.subr.mxu0 0.0
    %646 = vmatpush1.msra.mxu0 0.0
    %647 = vmatprep.subr.mxu0 0.0
    %648 = vmatpush1.msra.mxu0 0.0
    %649 = vmatprep.subr.mxu0 0.0
    %650 = vmatpush1.msra.mxu0 0.0
    %651 = vmatprep.subr.mxu0 0.0
    %652 = vmatpush1.msra.mxu0 0.0
    %653 = vmatprep.subr.mxu0 0.0
    %654 = vmatpush1.msra.mxu0 0.0
    %655 = vmatprep.subr.mxu0 0.0
    %656 = vmatpush1.msra.mxu0 0.0
    %657 = vmatprep.subr.mxu0 0.0
    %658 = vmatpush1.msra.mxu0 0.0
    %659 = vmatprep.subr.mxu0 0.0
    %660 = vmatpush1.msra.mxu0 0.0
    %661 = vmatprep.subr.mxu0 0.0
    %662 = vmatpush1.msra.mxu0 0.0
    %663 = vmatprep.subr.mxu0 0.0
    %664 = vmatpush1.msra.mxu0 0.0
    %665 = vmatprep.subr.mxu0 0.0
    %666 = vmatpush1.msra.mxu0 0.0
    %667 = vmatprep.subr.mxu0 0.0
    %668 = vmatpush1.msra.mxu0 0.0
    %669 = vmatprep.subr.mxu0 0.0
    %670 = vmatpush1.msra.mxu0 0.0
    %671 = vmatprep.subr.mxu0 0.0
    %672 = vmatpush1.msra.mxu0 0.0
    %673 = vmatprep.subr.mxu0 0.0
    %674 = vmatpush1.msra.mxu0 0.0
    %675 = vmatprep.subr.mxu0 0.0
    %676 = vmatpush1.msra.mxu0 0.0
    %677 = vmatprep.subr.mxu0 0.0
    %678 = vmatpush1.msra.mxu0 0.0
    %679 = vmatprep.subr.mxu0 0.0
    %680 = vmatpush1.msra.mxu0 0.0
    %681 = vmatprep.subr.mxu0 0.0
    %682 = vmatpush1.msra.mxu0 0.0
    %683 = vmatprep.subr.mxu0 0.0
    %684 = vmatpush1.msra.mxu0 0.0
    %685 = vmatprep.subr.mxu0 0.0
    %686 = vmatpush1.msra.mxu0 0.0
    %687 = vmatprep.subr.mxu0 0.0
    %688 = vmatpush1.msra.mxu0 0.0
    %689 = vmatprep.subr.mxu0 0.0
    %690 = vmatpush1.msra.mxu0 0.0
    %691 = vmatprep.mubr.f32.mxu0 0.0
    %692 = vmatmul.mubr.f32.gmra.mrb[0].mxu0 %v625
    %v693 = vpop.f32.mrb[0].mxu0
    %v694 = vadd.f32 0.0, %v693
    %v695 = vpop.f32.mrb[0].mxu0
    %696 = vdwg.mxu0
    %697 = vrot.lane.b32.xlu0 %v439, 96
    %v698 = vpop.permute.xlu0 %697
    %v701 = vsel %vm442, %v620, 0
    %703 = vmatprep.subr.mxu0 0.0
    %704 = vmatpush1.msra.mxu0 %v698
    %705 = vmatprep.subr.mxu0 0.0
    %706 = vmatpush1.msra.mxu0 0.0
    %707 = vmatprep.subr.mxu0 0.0
    %708 = vmatpush1.msra.mxu0 0.0
    %709 = vmatprep.subr.mxu0 0.0
    %710 = vmatpush1.msra.mxu0 0.0
    %711 = vmatprep.subr.mxu0 0.0
    %712 = vmatpush1.msra.mxu0 0.0
    %713 = vmatprep.subr.mxu0 0.0
    %714 = vmatpush1.msra.mxu0 0.0
    %715 = vmatprep.subr.mxu0 0.0
    %716 = vmatpush1.msra.mxu0 0.0
    %717 = vmatprep.subr.mxu0 0.0
    %718 = vmatpush1.msra.mxu0 0.0
    %719 = vmatprep.subr.mxu0 0.0
    %720 = vmatpush1.msra.mxu0 0.0
    %721 = vmatprep.subr.mxu0 0.0
    %722 = vmatpush1.msra.mxu0 0.0
    %723 = vmatprep.subr.mxu0 0.0
    %724 = vmatpush1.msra.mxu0 0.0
    %725 = vmatprep.subr.mxu0 0.0
    %726 = vmatpush1.msra.mxu0 0.0
    %727 = vmatprep.subr.mxu0 0.0
    %728 = vmatpush1.msra.mxu0 0.0
    %729 = vmatprep.subr.mxu0 0.0
    %730 = vmatpush1.msra.mxu0 0.0
    %731 = vmatprep.subr.mxu0 0.0
    %732 = vmatpush1.msra.mxu0 0.0
    %733 = vmatprep.subr.mxu0 0.0
    %734 = vmatpush1.msra.mxu0 0.0
    %735 = vmatprep.subr.mxu0 0.0
    %736 = vmatpush1.msra.mxu0 0.0
    %737 = vmatprep.subr.mxu0 0.0
    %738 = vmatpush1.msra.mxu0 0.0
    %739 = vmatprep.subr.mxu0 0.0
    %740 = vmatpush1.msra.mxu0 0.0
    %741 = vmatprep.subr.mxu0 0.0
    %742 = vmatpush1.msra.mxu0 0.0
    %743 = vmatprep.subr.mxu0 0.0
    %744 = vmatpush1.msra.mxu0 0.0
    %745 = vmatprep.subr.mxu0 0.0
    %746 = vmatpush1.msra.mxu0 0.0
    %747 = vmatprep.subr.mxu0 0.0
    %748 = vmatpush1.msra.mxu0 0.0
    %749 = vmatprep.subr.mxu0 0.0
    %750 = vmatpush1.msra.mxu0 0.0
    %751 = vmatprep.subr.mxu0 0.0
    %752 = vmatpush1.msra.mxu0 0.0
    %753 = vmatprep.subr.mxu0 0.0
    %754 = vmatpush1.msra.mxu0 0.0
    %755 = vmatprep.subr.mxu0 0.0
    %756 = vmatpush1.msra.mxu0 0.0
    %757 = vmatprep.subr.mxu0 0.0
    %758 = vmatpush1.msra.mxu0 0.0
    %759 = vmatprep.subr.mxu0 0.0
    %760 = vmatpush1.msra.mxu0 0.0
    %761 = vmatprep.subr.mxu0 0.0
    %762 = vmatpush1.msra.mxu0 0.0
    %763 = vmatprep.subr.mxu0 0.0
    %764 = vmatpush1.msra.mxu0 0.0
    %765 = vmatprep.subr.mxu0 0.0
    %766 = vmatpush1.msra.mxu0 0.0
    %767 = vmatprep.mubr.f32.mxu0 0.0
    %768 = vmatmul.mubr.f32.gmra.mrb[0].mxu0 %v701
    %v769 = vpop.f32.mrb[0].mxu0
    %v770 = vadd.f32 0.0, %v769
    %v771 = vpop.f32.mrb[0].mxu0
    %772 = vdwg.mxu0
    %v773 = vld [vmem:[#allocation11] sm:$0xff]
    %774 = vrot.lane.b32.xlu0 %v287, 120
    %v775 = vpop.permute.xlu0 %774
    %776 = vrot.lane.b32.xlu0 %v366, 120
    %v777 = vpop.permute.xlu0 %776
    %v778 = vsel %vm442, %v775, 0
    %v780 = vsel %vm442, %v777, 0
    %782 = vmatprep.subr.mxu0 0.0
    %783 = vmatpush1.xpose.msra.mxu0 %v780
    %784 = vmatprep.subr.mxu0 0.0
    %785 = vmatpush1.xpose.msra.mxu0 0.0
    %786 = vmatprep.subr.mxu0 0.0
    %787 = vmatpush1.xpose.msra.mxu0 0.0
    %788 = vmatprep.subr.mxu0 0.0
    %789 = vmatpush1.xpose.msra.mxu0 0.0
    %790 = vmatprep.subr.mxu0 0.0
    %791 = vmatpush1.xpose.msra.mxu0 0.0
    %792 = vmatprep.subr.mxu0 0.0
    %793 = vmatpush1.xpose.msra.mxu0 0.0
    %794 = vmatprep.subr.mxu0 0.0
    %795 = vmatpush1.xpose.msra.mxu0 0.0
    %796 = vmatprep.subr.mxu0 0.0
    %797 = vmatpush1.xpose.msra.mxu0 0.0
    %798 = vmatprep.subr.mxu0 0.0
    %799 = vmatpush1.xpose.msra.mxu0 0.0
    %800 = vmatprep.subr.mxu0 0.0
    %801 = vmatpush1.xpose.msra.mxu0 0.0
    %802 = vmatprep.subr.mxu0 0.0
    %803 = vmatpush1.xpose.msra.mxu0 0.0
    %804 = vmatprep.subr.mxu0 0.0
    %805 = vmatpush1.xpose.msra.mxu0 0.0
    %806 = vmatprep.subr.mxu0 0.0
    %807 = vmatpush1.xpose.msra.mxu0 0.0
    %808 = vmatprep.subr.mxu0 0.0
    %809 = vmatpush1.xpose.msra.mxu0 0.0
    %810 = vmatprep.subr.mxu0 0.0
    %811 = vmatpush1.xpose.msra.mxu0 0.0
    %812 = vmatprep.subr.mxu0 0.0
    %813 = vmatpush1.xpose.msra.mxu0 0.0
    %814 = vmatprep.subr.mxu0 0.0
    %815 = vmatpush1.xpose.msra.mxu0 0.0
    %816 = vmatprep.subr.mxu0 0.0
    %817 = vmatpush1.xpose.msra.mxu0 0.0
    %818 = vmatprep.subr.mxu0 0.0
    %819 = vmatpush1.xpose.msra.mxu0 0.0
    %820 = vmatprep.subr.mxu0 0.0
    %821 = vmatpush1.xpose.msra.mxu0 0.0
    %822 = vmatprep.subr.mxu0 0.0
    %823 = vmatpush1.xpose.msra.mxu0 0.0
    %824 = vmatprep.subr.mxu0 0.0
    %825 = vmatpush1.xpose.msra.mxu0 0.0
    %826 = vmatprep.subr.mxu0 0.0
    %827 = vmatpush1.xpose.msra.mxu0 0.0
    %828 = vmatprep.subr.mxu0 0.0
    %829 = vmatpush1.xpose.msra.mxu0 0.0
    %830 = vmatprep.subr.mxu0 0.0
    %831 = vmatpush1.xpose.msra.mxu0 0.0
    %832 = vmatprep.subr.mxu0 0.0
    %833 = vmatpush1.xpose.msra.mxu0 0.0
    %834 = vmatprep.subr.mxu0 0.0
    %835 = vmatpush1.xpose.msra.mxu0 0.0
    %836 = vmatprep.subr.mxu0 0.0
    %837 = vmatpush1.xpose.msra.mxu0 0.0
    %838 = vmatprep.subr.mxu0 0.0
    %839 = vmatpush1.xpose.msra.mxu0 0.0
    %840 = vmatprep.subr.mxu0 0.0
    %841 = vmatpush1.xpose.msra.mxu0 0.0
    %842 = vmatprep.subr.mxu0 0.0
    %843 = vmatpush1.xpose.msra.mxu0 0.0
    %844 = vmatprep.subr.mxu0 0.0
    %845 = vmatpush1.xpose.msra.mxu0 0.0
    %846 = vmatprep.mubr.f32.mxu0 0.0
    %847 = vmatmul.mubr.f32.gmra.mrb[0].mxu0 %v778
    %v848 = vpop.f32.mrb[0].mxu0
    %v849 = vadd.f32 0.0, %v848
    %v850 = vpop.f32.mrb[0].mxu0
    %851 = vdwg.mxu0
    %852 = vrot.lane.b32.xlu0 %v288, 120
    %v853 = vpop.permute.xlu0 %852
    %854 = vrot.lane.b32.xlu0 %v439, 120
    %v855 = vpop.permute.xlu0 %854
    %v856 = vsel %vm442, %v853, 0
    %v858 = vsel %vm442, %v855, 0
    %860 = vmatprep.subr.mxu0 0.0
    %861 = vmatpush1.xpose.msra.mxu0 %v858
    %862 = vmatprep.subr.mxu0 0.0
    %863 = vmatpush1.xpose.msra.mxu0 0.0
    %864 = vmatprep.subr.mxu0 0.0
    %865 = vmatpush1.xpose.msra.mxu0 0.0
    %866 = vmatprep.subr.mxu0 0.0
    %867 = vmatpush1.xpose.msra.mxu0 0.0
    %868 = vmatprep.subr.mxu0 0.0
    %869 = vmatpush1.xpose.msra.mxu0 0.0
    %870 = vmatprep.subr.mxu0 0.0
    %871 = vmatpush1.xpose.msra.mxu0 0.0
    %872 = vmatprep.subr.mxu0 0.0
    %873 = vmatpush1.xpose.msra.mxu0 0.0
    %874 = vmatprep.subr.mxu0 0.0
    %875 = vmatpush1.xpose.msra.mxu0 0.0
    %876 = vmatprep.subr.mxu0 0.0
    %877 = vmatpush1.xpose.msra.mxu0 0.0
    %878 = vmatprep.subr.mxu0 0.0
    %879 = vmatpush1.xpose.msra.mxu0 0.0
    %880 = vmatprep.subr.mxu0 0.0
    %881 = vmatpush1.xpose.msra.mxu0 0.0
    %882 = vmatprep.subr.mxu0 0.0
    %883 = vmatpush1.xpose.msra.mxu0 0.0
    %884 = vmatprep.subr.mxu0 0.0
    %885 = vmatpush1.xpose.msra.mxu0 0.0
    %886 = vmatprep.subr.mxu0 0.0
    %887 = vmatpush1.xpose.msra.mxu0 0.0
    %888 = vmatprep.subr.mxu0 0.0
    %889 = vmatpush1.xpose.msra.mxu0 0.0
    %890 = vmatprep.subr.mxu0 0.0
    %891 = vmatpush1.xpose.msra.mxu0 0.0
    %892 = vmatprep.subr.mxu0 0.0
    %893 = vmatpush1.xpose.msra.mxu0 0.0
    %894 = vmatprep.subr.mxu0 0.0
    %895 = vmatpush1.xpose.msra.mxu0 0.0
    %896 = vmatprep.subr.mxu0 0.0
    %897 = vmatpush1.xpose.msra.mxu0 0.0
    %898 = vmatprep.subr.mxu0 0.0
    %899 = vmatpush1.xpose.msra.mxu0 0.0
    %900 = vmatprep.subr.mxu0 0.0
    %901 = vmatpush1.xpose.msra.mxu0 0.0
    %902 = vmatprep.subr.mxu0 0.0
    %903 = vmatpush1.xpose.msra.mxu0 0.0
    %904 = vmatprep.subr.mxu0 0.0
    %905 = vmatpush1.xpose.msra.mxu0 0.0
    %906 = vmatprep.subr.mxu0 0.0
    %907 = vmatpush1.xpose.msra.mxu0 0.0
    %908 = vmatprep.subr.mxu0 0.0
    %909 = vmatpush1.xpose.msra.mxu0 0.0
    %910 = vmatprep.subr.mxu0 0.0
    %911 = vmatpush1.xpose.msra.mxu0 0.0
    %912 = vmatprep.subr.mxu0 0.0
    %913 = vmatpush1.xpose.msra.mxu0 0.0
    %914 = vmatprep.subr.mxu0 0.0
    %915 = vmatpush1.xpose.msra.mxu0 0.0
    %916 = vmatprep.subr.mxu0 0.0
    %917 = vmatpush1.xpose.msra.mxu0 0.0
    %918 = vmatprep.subr.mxu0 0.0
    %919 = vmatpush1.xpose.msra.mxu0 0.0
    %920 = vmatprep.subr.mxu0 0.0
    %921 = vmatpush1.xpose.msra.mxu0 0.0
    %922 = vmatprep.subr.mxu0 0.0
    %923 = vmatpush1.xpose.msra.mxu0 0.0
    %924 = vmatprep.mubr.f32.mxu0 0.0
    %925 = vmatmul.mubr.f32.gmra.mrb[0].mxu0 %v856
    %v926 = vpop.f32.mrb[0].mxu0
    %v927 = vadd.f32 0.0, %v926
    %v928 = vpop.f32.mrb[0].mxu0
    %929 = vdwg.mxu0
    %v930 = vmul.f32 %v849, %v119
    %v931 = vmul.f32 %v927, %v120
    %v932 = vadd.f32 %v930, %v123
    %v933 = vadd.f32 %v931, %v124
    %v934 = vsel %vm442, %v932, -inf
    %935 = vmax.xlane.f32.xlu0 %v934
    %v936 = vpop.xlane.xlu0 %935
    %v937 = vsel %vm442, %v933, -inf
    %938 = vmax.xlane.f32.xlu0 %v937
    %v939 = vpop.xlane.xlu0 %938
    %v940 = vsub.f32 %v932, %v936
    %v941 = vsub.f32 %v933, %v939
    %v942 = vmul.f32 %v940, 1.442695
    %v943 = vpow.pop %v942
    %v944 = vmul.f32 %v941, 1.442695
    %v945 = vpow.pop %v944
    %v946 = vsel %vm442, %v943, 0.0
    %947 = vadd.xlane.f32.xlu0 %v946
    %v948 = vpop.xlane.xlu0 %947
    %v949 = vsel %vm442, %v945, 0.0
    %950 = vadd.xlane.f32.xlu0 %v949
    %v951 = vpop.xlane.xlu0 %950
    %v952 = vrcp.pop %v948
    %v953 = vrcp.pop %v951
    %v954 = vmul.f32 %v943, %v952
    %v955 = vmul.f32 %v945, %v953
    %956 = vrot.lane.b32.xlu0 %v366, 88
    %v957 = vpop.permute.xlu0 %956
    %v960 = vsel %vm442, %v954, 0
    %962 = vmatprep.subr.mxu0 0.0
    %963 = vmatpush1.msra.mxu0 %v957
    %964 = vmatprep.subr.mxu0 0.0
    %965 = vmatpush1.msra.mxu0 0.0
    %966 = vmatprep.subr.mxu0 0.0
    %967 = vmatpush1.msra.mxu0 0.0
    %968 = vmatprep.subr.mxu0 0.0
    %969 = vmatpush1.msra.mxu0 0.0
    %970 = vmatprep.subr.mxu0 0.0
    %971 = vmatpush1.msra.mxu0 0.0
    %972 = vmatprep.subr.mxu0 0.0
    %973 = vmatpush1.msra.mxu0 0.0
    %974 = vmatprep.subr.mxu0 0.0
    %975 = vmatpush1.msra.mxu0 0.0
    %976 = vmatprep.subr.mxu0 0.0
    %977 = vmatpush1.msra.mxu0 0.0
    %978 = vmatprep.subr.mxu0 0.0
    %979 = vmatpush1.msra.mxu0 0.0
    %980 = vmatprep.subr.mxu0 0.0
    %981 = vmatpush1.msra.mxu0 0.0
    %982 = vmatprep.subr.mxu0 0.0
    %983 = vmatpush1.msra.mxu0 0.0
    %984 = vmatprep.subr.mxu0 0.0
    %985 = vmatpush1.msra.mxu0 0.0
    %986 = vmatprep.subr.mxu0 0.0
    %987 = vmatpush1.msra.mxu0 0.0
    %988 = vmatprep.subr.mxu0 0.0
    %989 = vmatpush1.msra.mxu0 0.0
    %990 = vmatprep.subr.mxu0 0.0
    %991 = vmatpush1.msra.mxu0 0.0
    %992 = vmatprep.subr.mxu0 0.0
    %993 = vmatpush1.msra.mxu0 0.0
    %994 = vmatprep.subr.mxu0 0.0
    %995 = vmatpush1.msra.mxu0 0.0
    %996 = vmatprep.subr.mxu0 0.0
    %997 = vmatpush1.msra.mxu0 0.0
    %998 = vmatprep.subr.mxu0 0.0
    %999 = vmatpush1.msra.mxu0 0.0
    %1000 = vmatprep.subr.mxu0 0.0
    %1001 = vmatpush1.msra.mxu0 0.0
    %1002 = vmatprep.subr.mxu0 0.0
    %1003 = vmatpush1.msra.mxu0 0.0
    %1004 = vmatprep.subr.mxu0 0.0
    %1005 = vmatpush1.msra.mxu0 0.0
    %1006 = vmatprep.subr.mxu0 0.0
    %1007 = vmatpush1.msra.mxu0 0.0
    %1008 = vmatprep.subr.mxu0 0.0
    %1009 = vmatpush1.msra.mxu0 0.0
    %1010 = vmatprep.subr.mxu0 0.0
    %1011 = vmatpush1.msra.mxu0 0.0
    %1012 = vmatprep.subr.mxu0 0.0
    %1013 = vmatpush1.msra.mxu0 0.0
    %1014 = vmatprep.subr.mxu0 0.0
    %1015 = vmatpush1.msra.mxu0 0.0
    %1016 = vmatprep.subr.mxu0 0.0
    %1017 = vmatpush1.msra.mxu0 0.0
    %1018 = vmatprep.subr.mxu0 0.0
    %1019 = vmatpush1.msra.mxu0 0.0
    %1020 = vmatprep.subr.mxu0 0.0
    %1021 = vmatpush1.msra.mxu0 0.0
    %1022 = vmatprep.subr.mxu0 0.0
    %1023 = vmatpush1.msra.mxu0 0.0
    %1024 = vmatprep.subr.mxu0 0.0
    %1025 = vmatpush1.msra.mxu0 0.0
    %1026 = vmatprep.mubr.f32.mxu0 0.0
    %1027 = vmatmul.mubr.f32.gmra.mrb[0].mxu0 %v960
    %v1028 = vpop.f32.mrb[0].mxu0
    %v1029 = vadd.f32 0.0, %v1028
    %v1030 = vpop.f32.mrb[0].mxu0
    %1031 = vdwg.mxu0
    %1032 = vrot.lane.b32.xlu0 %v439, 88
    %v1033 = vpop.permute.xlu0 %1032
    %v1036 = vsel %vm442, %v955, 0
    %1038 = vmatprep.subr.mxu0 0.0
    %1039 = vmatpush1.msra.mxu0 %v1033
    %1040 = vmatprep.subr.mxu0 0.0
    %1041 = vmatpush1.msra.mxu0 0.0
    %1042 = vmatprep.subr.mxu0 0.0
    %1043 = vmatpush1.msra.mxu0 0.0
    %1044 = vmatprep.subr.mxu0 0.0
    %1045 = vmatpush1.msra.mxu0 0.0
    %1046 = vmatprep.subr.mxu0 0.0
    %1047 = vmatpush1.msra.mxu0 0.0
    %1048 = vmatprep.subr.mxu0 0.0
    %1049 = vmatpush1.msra.mxu0 0.0
    %1050 = vmatprep.subr.mxu0 0.0
    %1051 = vmatpush1.msra.mxu0 0.0
    %1052 = vmatprep.subr.mxu0 0.0
    %1053 = vmatpush1.msra.mxu0 0.0
    %1054 = vmatprep.subr.mxu0 0.0
    %1055 = vmatpush1.msra.mxu0 0.0
    %1056 = vmatprep.subr.mxu0 0.0
    %1057 = vmatpush1.msra.mxu0 0.0
    %1058 = vmatprep.subr.mxu0 0.0
    %1059 = vmatpush1.msra.mxu0 0.0
    %1060 = vmatprep.subr.mxu0 0.0
    %1061 = vmatpush1.msra.mxu0 0.0
    %1062 = vmatprep.subr.mxu0 0.0
    %1063 = vmatpush1.msra.mxu0 0.0
    %1064 = vmatprep.subr.mxu0 0.0
    %1065 = vmatpush1.msra.mxu0 0.0
    %1066 = vmatprep.subr.mxu0 0.0
    %1067 = vmatpush1.msra.mxu0 0.0
    %1068 = vmatprep.subr.mxu0 0.0
    %1069 = vmatpush1.msra.mxu0 0.0
    %1070 = vmatprep.subr.mxu0 0.0
    %1071 = vmatpush1.msra.mxu0 0.0
    %1072 = vmatprep.subr.mxu0 0.0
    %1073 = vmatpush1.msra.mxu0 0.0
    %1074 = vmatprep.subr.mxu0 0.0
    %1075 = vmatpush1.msra.mxu0 0.0
    %1076 = vmatprep.subr.mxu0 0.0
    %1077 = vmatpush1.msra.mxu0 0.0
    %1078 = vmatprep.subr.mxu0 0.0
    %1079 = vmatpush1.msra.mxu0 0.0
    %1080 = vmatprep.subr.mxu0 0.0
    %1081 = vmatpush1.msra.mxu0 0.0
    %1082 = vmatprep.subr.mxu0 0.0
    %1083 = vmatpush1.msra.mxu0 0.0
    %1084 = vmatprep.subr.mxu0 0.0
    %1085 = vmatpush1.msra.mxu0 0.0
    %1086 = vmatprep.subr.mxu0 0.0
    %1087 = vmatpush1.msra.mxu0 0.0
    %1088 = vmatprep.subr.mxu0 0.0
    %1089 = vmatpush1.msra.mxu0 0.0
    %1090 = vmatprep.subr.mxu0 0.0
    %1091 = vmatpush1.msra.mxu0 0.0
    %1092 = vmatprep.subr.mxu0 0.0
    %1093 = vmatpush1.msra.mxu0 0.0
    %1094 = vmatprep.subr.mxu0 0.0
    %1095 = vmatpush1.msra.mxu0 0.0
    %1096 = vmatprep.subr.mxu0 0.0
    %1097 = vmatpush1.msra.mxu0 0.0
    %1098 = vmatprep.subr.mxu0 0.0
    %1099 = vmatpush1.msra.mxu0 0.0
    %1100 = vmatprep.subr.mxu0 0.0
    %1101 = vmatpush1.msra.mxu0 0.0
    %1102 = vmatprep.mubr.f32.mxu0 0.0
    %1103 = vmatmul.mubr.f32.gmra.mrb[0].mxu0 %v1036
    %v1104 = vpop.f32.mrb[0].mxu0
    %v1105 = vadd.f32 0.0, %v1104
    %v1106 = vpop.f32.mrb[0].mxu0
    %1107 = vdwg.mxu0
    %v1108 = vld [vmem:[#allocation11 + $0x8] sm:$0xff]
    %v1110 = vsel %vm442, %v1029, 0
    %1112 = vmatprep.subr.mxu0 0.0
    %1113 = vmatpush1.msra.mxu0 %v1108
    %1114 = vmatprep.subr.mxu0 0.0
    %1115 = vmatpush1.msra.mxu0 0.0
    %1116 = vmatprep.subr.mxu0 0.0
    %1117 = vmatpush1.msra.mxu0 0.0
    %1118 = vmatprep.subr.mxu0 0.0
    %1119 = vmatpush1.msra.mxu0 0.0
    %1120 = vmatprep.subr.mxu0 0.0
    %1121 = vmatpush1.msra.mxu0 0.0
    %1122 = vmatprep.subr.mxu0 0.0
    %1123 = vmatpush1.msra.mxu0 0.0
    %1124 = vmatprep.subr.mxu0 0.0
    %1125 = vmatpush1.msra.mxu0 0.0
    %1126 = vmatprep.subr.mxu0 0.0
    %1127 = vmatpush1.msra.mxu0 0.0
    %1128 = vmatprep.subr.mxu0 0.0
    %1129 = vmatpush1.msra.mxu0 0.0
    %1130 = vmatprep.subr.mxu0 0.0
    %1131 = vmatpush1.msra.mxu0 0.0
    %1132 = vmatprep.subr.mxu0 0.0
    %1133 = vmatpush1.msra.mxu0 0.0
    %1134 = vmatprep.subr.mxu0 0.0
    %1135 = vmatpush1.msra.mxu0 0.0
    %1136 = vmatprep.subr.mxu0 0.0
    %1137 = vmatpush1.msra.mxu0 0.0
    %1138 = vmatprep.subr.mxu0 0.0
    %1139 = vmatpush1.msra.mxu0 0.0
    %1140 = vmatprep.subr.mxu0 0.0
    %1141 = vmatpush1.msra.mxu0 0.0
    %1142 = vmatprep.subr.mxu0 0.0
    %1143 = vmatpush1.msra.mxu0 0.0
    %1144 = vmatprep.subr.mxu0 0.0
    %1145 = vmatpush1.msra.mxu0 0.0
    %1146 = vmatprep.subr.mxu0 0.0
    %1147 = vmatpush1.msra.mxu0 0.0
    %1148 = vmatprep.subr.mxu0 0.0
    %1149 = vmatpush1.msra.mxu0 0.0
    %1150 = vmatprep.subr.mxu0 0.0
    %1151 = vmatpush1.msra.mxu0 0.0
    %1152 = vmatprep.subr.mxu0 0.0
    %1153 = vmatpush1.msra.mxu0 0.0
    %1154 = vmatprep.subr.mxu0 0.0
    %1155 = vmatpush1.msra.mxu0 0.0
    %1156 = vmatprep.subr.mxu0 0.0
    %1157 = vmatpush1.msra.mxu0 0.0
    %1158 = vmatprep.subr.mxu0 0.0
    %1159 = vmatpush1.msra.mxu0 0.0
    %1160 = vmatprep.subr.mxu0 0.0
    %1161 = vmatpush1.msra.mxu0 0.0
    %1162 = vmatprep.subr.mxu0 0.0
    %1163 = vmatpush1.msra.mxu0 0.0
    %1164 = vmatprep.subr.mxu0 0.0
    %1165 = vmatpush1.msra.mxu0 0.0
    %1166 = vmatprep.subr.mxu0 0.0
    %1167 = vmatpush1.msra.mxu0 0.0
    %1168 = vmatprep.subr.mxu0 0.0
    %1169 = vmatpush1.msra.mxu0 0.0
    %1170 = vmatprep.subr.mxu0 0.0
    %1171 = vmatpush1.msra.mxu0 0.0
    %1172 = vmatprep.subr.mxu0 0.0
    %1173 = vmatpush1.msra.mxu0 0.0
    %1174 = vmatprep.subr.mxu0 0.0
    %1175 = vmatpush1.msra.mxu0 0.0
    %1176 = vmatprep.mubr.f32.mxu0 0.0
    %1177 = vmatmul.mubr.f32.gmra.mrb[0].mxu0 %v1110
    %v1178 = vpop.f32.mrb[0].mxu0
    %v1179 = vadd.f32 0.0, %v1178
    %v1180 = vpop.f32.mrb[0].mxu0
    %1181 = vdwg.mxu0
    %v1183 = vsel %vm442, %v1105, 0
    %1185 = vmatprep.subr.mxu0 0.0
    %1186 = vmatpush1.msra.mxu0 %v1108
    %1187 = vmatprep.subr.mxu0 0.0
    %1188 = vmatpush1.msra.mxu0 0.0
    %1189 = vmatprep.subr.mxu0 0.0
    %1190 = vmatpush1.msra.mxu0 0.0
    %1191 = vmatprep.subr.mxu0 0.0
    %1192 = vmatpush1.msra.mxu0 0.0
    %1193 = vmatprep.subr.mxu0 0.0
    %1194 = vmatpush1.msra.mxu0 0.0
    %1195 = vmatprep.subr.mxu0 0.0
    %1196 = vmatpush1.msra.mxu0 0.0
    %1197 = vmatprep.subr.mxu0 0.0
    %1198 = vmatpush1.msra.mxu0 0.0
    %1199 = vmatprep.subr.mxu0 0.0
    %1200 = vmatpush1.msra.mxu0 0.0
    %1201 = vmatprep.subr.mxu0 0.0
    %1202 = vmatpush1.msra.mxu0 0.0
    %1203 = vmatprep.subr.mxu0 0.0
    %1204 = vmatpush1.msra.mxu0 0.0
    %1205 = vmatprep.subr.mxu0 0.0
    %1206 = vmatpush1.msra.mxu0 0.0
    %1207 = vmatprep.subr.mxu0 0.0
    %1208 = vmatpush1.msra.mxu0 0.0
    %1209 = vmatprep.subr.mxu0 0.0
    %1210 = vmatpush1.msra.mxu0 0.0
    %1211 = vmatprep.subr.mxu0 0.0
    %1212 = vmatpush1.msra.mxu0 0.0
    %1213 = vmatprep.subr.mxu0 0.0
    %1214 = vmatpush1.msra.mxu0 0.0
    %1215 = vmatprep.subr.mxu0 0.0
    %1216 = vmatpush1.msra.mxu0 0.0
    %1217 = vmatprep.subr.mxu0 0.0
    %1218 = vmatpush1.msra.mxu0 0.0
    %1219 = vmatprep.subr.mxu0 0.0
    %1220 = vmatpush1.msra.mxu0 0.0
    %1221 = vmatprep.subr.mxu0 0.0
    %1222 = vmatpush1.msra.mxu0 0.0
    %1223 = vmatprep.subr.mxu0 0.0
    %1224 = vmatpush1.msra.mxu0 0.0
    %1225 = vmatprep.subr.mxu0 0.0
    %1226 = vmatpush1.msra.mxu0 0.0
    %1227 = vmatprep.subr.mxu0 0.0
    %1228 = vmatpush1.msra.mxu0 0.0
    %1229 = vmatprep.subr.mxu0 0.0
    %1230 = vmatpush1.msra.mxu0 0.0
    %1231 = vmatprep.subr.mxu0 0.0
    %1232 = vmatpush1.msra.mxu0 0.0
    %1233 = vmatprep.subr.mxu0 0.0
    %1234 = vmatpush1.msra.mxu0 0.0
    %1235 = vmatprep.subr.mxu0 0.0
    %1236 = vmatpush1.msra.mxu0 0.0
    %1237 = vmatprep.subr.mxu0 0.0
    %1238 = vmatpush1.msra.mxu0 0.0
    %1239 = vmatprep.subr.mxu0 0.0
    %1240 = vmatpush1.msra.mxu0 0.0
    %1241 = vmatprep.subr.mxu0 0.0
    %1242 = vmatpush1.msra.mxu0 0.0
    %1243 = vmatprep.subr.mxu0 0.0
    %1244 = vmatpush1.msra.mxu0 0.0
    %1245 = vmatprep.subr.mxu0 0.0
    %1246 = vmatpush1.msra.mxu0 0.0
    %1247 = vmatprep.subr.mxu0 0.0
    %1248 = vmatpush1.msra.mxu0 0.0
    %1249 = vmatprep.mubr.f32.mxu0 0.0
    %1250 = vmatmul.mubr.f32.gmra.mrb[0].mxu0 %v1183
    %v1251 = vpop.f32.mrb[0].mxu0
    %v1252 = vadd.f32 0.0, %v1251
    %v1253 = vpop.f32.mrb[0].mxu0
    %1254 = vdwg.mxu0
    %v1256 = vsel %vm442, %v694, 0
    %1258 = vmatprep.subr.mxu0 0.0
    %1259 = vmatpush1.msra.mxu0 %v773
    %1260 = vmatprep.subr.mxu0 0.0
    %1261 = vmatpush1.msra.mxu0 0.0
    %1262 = vmatprep.subr.mxu0 0.0
    %1263 = vmatpush1.msra.mxu0 0.0
    %1264 = vmatprep.subr.mxu0 0.0
    %1265 = vmatpush1.msra.mxu0 0.0
    %1266 = vmatprep.subr.mxu0 0.0
    %1267 = vmatpush1.msra.mxu0 0.0
    %1268 = vmatprep.subr.mxu0 0.0
    %1269 = vmatpush1.msra.mxu0 0.0
    %1270 = vmatprep.subr.mxu0 0.0
    %1271 = vmatpush1.msra.mxu0 0.0
    %1272 = vmatprep.subr.mxu0 0.0
    %1273 = vmatpush1.msra.mxu0 0.0
    %1274 = vmatprep.subr.mxu0 0.0
    %1275 = vmatpush1.msra.mxu0 0.0
    %1276 = vmatprep.subr.mxu0 0.0
    %1277 = vmatpush1.msra.mxu0 0.0
    %1278 = vmatprep.subr.mxu0 0.0
    %1279 = vmatpush1.msra.mxu0 0.0
    %1280 = vmatprep.subr.mxu0 0.0
    %1281 = vmatpush1.msra.mxu0 0.0
    %1282 = vmatprep.subr.mxu0 0.0
    %1283 = vmatpush1.msra.mxu0 0.0
    %1284 = vmatprep.subr.mxu0 0.0
    %1285 = vmatpush1.msra.mxu0 0.0
    %1286 = vmatprep.subr.mxu0 0.0
    %1287 = vmatpush1.msra.mxu0 0.0
    %1288 = vmatprep.subr.mxu0 0.0
    %1289 = vmatpush1.msra.mxu0 0.0
    %1290 = vmatprep.subr.mxu0 0.0
    %1291 = vmatpush1.msra.mxu0 0.0
    %1292 = vmatprep.subr.mxu0 0.0
    %1293 = vmatpush1.msra.mxu0 0.0
    %1294 = vmatprep.subr.mxu0 0.0
    %1295 = vmatpush1.msra.mxu0 0.0
    %1296 = vmatprep.subr.mxu0 0.0
    %1297 = vmatpush1.msra.mxu0 0.0
    %1298 = vmatprep.subr.mxu0 0.0
    %1299 = vmatpush1.msra.mxu0 0.0
    %1300 = vmatprep.subr.mxu0 0.0
    %1301 = vmatpush1.msra.mxu0 0.0
    %1302 = vmatprep.subr.mxu0 0.0
    %1303 = vmatpush1.msra.mxu0 0.0
    %1304 = vmatprep.subr.mxu0 0.0
    %1305 = vmatpush1.msra.mxu0 0.0
    %1306 = vmatprep.subr.mxu0 0.0
    %1307 = vmatpush1.msra.mxu0 0.0
    %1308 = vmatprep.subr.mxu0 0.0
    %1309 = vmatpush1.msra.mxu0 0.0
    %1310 = vmatprep.subr.mxu0 0.0
    %1311 = vmatpush1.msra.mxu0 0.0
    %1312 = vmatprep.subr.mxu0 0.0
    %1313 = vmatpush1.msra.mxu0 0.0
    %1314 = vmatprep.subr.mxu0 0.0
    %1315 = vmatpush1.msra.mxu0 0.0
    %1316 = vmatprep.subr.mxu0 0.0
    %1317 = vmatpush1.msra.mxu0 0.0
    %1318 = vmatprep.subr.mxu0 0.0
    %1319 = vmatpush1.msra.mxu0 0.0
    %1320 = vmatprep.subr.mxu0 0.0
    %1321 = vmatpush1.msra.mxu0 0.0
    %1322 = vmatprep.mubr.f32.mxu0 0.0
    %1323 = vmatmul.mubr.f32.gmra.mrb[0].mxu0 %v1256
    %v1324 = vpop.f32.mrb[0].mxu0
    %v1325 = vadd.f32 %v1179, %v1324
    %v1326 = vpop.f32.mrb[0].mxu0
    %1327 = vdwg.mxu0
    %v1329 = vsel %vm442, %v770, 0
    %1331 = vmatprep.subr.mxu0 0.0
    %1332 = vmatpush1.msra.mxu0 %v773
    %1333 = vmatprep.subr.mxu0 0.0
    %1334 = vmatpush1.msra.mxu0 0.0
    %1335 = vmatprep.subr.mxu0 0.0
    %1336 = vmatpush1.msra.mxu0 0.0
    %1337 = vmatprep.subr.mxu0 0.0
    %1338 = vmatpush1.msra.mxu0 0.0
    %1339 = vmatprep.subr.mxu0 0.0
    %1340 = vmatpush1.msra.mxu0 0.0
    %1341 = vmatprep.subr.mxu0 0.0
    %1342 = vmatpush1.msra.mxu0 0.0
    %1343 = vmatprep.subr.mxu0 0.0
    %1344 = vmatpush1.msra.mxu0 0.0
    %1345 = vmatprep.subr.mxu0 0.0
    %1346 = vmatpush1.msra.mxu0 0.0
    %1347 = vmatprep.subr.mxu0 0.0
    %1348 = vmatpush1.msra.mxu0 0.0
    %1349 = vmatprep.subr.mxu0 0.0
    %1350 = vmatpush1.msra.mxu0 0.0
    %1351 = vmatprep.subr.mxu0 0.0
    %1352 = vmatpush1.msra.mxu0 0.0
    %1353 = vmatprep.subr.mxu0 0.0
    %1354 = vmatpush1.msra.mxu0 0.0
    %1355 = vmatprep.subr.mxu0 0.0
    %1356 = vmatpush1.msra.mxu0 0.0
    %1357 = vmatprep.subr.mxu0 0.0
    %1358 = vmatpush1.msra.mxu0 0.0
    %1359 = vmatprep.subr.mxu0 0.0
    %1360 = vmatpush1.msra.mxu0 0.0
    %1361 = vmatprep.subr.mxu0 0.0
    %1362 = vmatpush1.msra.mxu0 0.0
    %1363 = vmatprep.subr.mxu0 0.0
    %1364 = vmatpush1.msra.mxu0 0.0
    %1365 = vmatprep.subr.mxu0 0.0
    %1366 = vmatpush1.msra.mxu0 0.0
    %1367 = vmatprep.subr.mxu0 0.0
    %1368 = vmatpush1.msra.mxu0 0.0
    %1369 = vmatprep.subr.mxu0 0.0
    %1370 = vmatpush1.msra.mxu0 0.0
    %1371 = vmatprep.subr.mxu0 0.0
    %1372 = vmatpush1.msra.mxu0 0.0
    %1373 = vmatprep.subr.mxu0 0.0
    %1374 = vmatpush1.msra.mxu0 0.0
    %1375 = vmatprep.subr.mxu0 0.0
    %1376 = vmatpush1.msra.mxu0 0.0
    %1377 = vmatprep.subr.mxu0 0.0
    %1378 = vmatpush1.msra.mxu0 0.0
    %1379 = vmatprep.subr.mxu0 0.0
    %1380 = vmatpush1.msra.mxu0 0.0
    %1381 = vmatprep.subr.mxu0 0.0
    %1382 = vmatpush1.msra.mxu0 0.0
    %1383 = vmatprep.subr.mxu0 0.0
    %1384 = vmatpush1.msra.mxu0 0.0
    %1385 = vmatprep.subr.mxu0 0.0
    %1386 = vmatpush1.msra.mxu0 0.0
    %1387 = vmatprep.subr.mxu0 0.0
    %1388 = vmatpush1.msra.mxu0 0.0
    %1389 = vmatprep.subr.mxu0 0.0
    %1390 = vmatpush1.msra.mxu0 0.0
    %1391 = vmatprep.subr.mxu0 0.0
    %1392 = vmatpush1.msra.mxu0 0.0
    %1393 = vmatprep.subr.mxu0 0.0
    %1394 = vmatpush1.msra.mxu0 0.0
    %1395 = vmatprep.mubr.f32.mxu0 0.0
    %1396 = vmatmul.mubr.f32.gmra.mrb[0].mxu0 %v1329
    %v1397 = vpop.f32.mrb[0].mxu0
    %v1398 = vadd.f32 %v1252, %v1397
    %v1399 = vpop.f32.mrb[0].mxu0
    %1400 = vdwg.mxu0
    %1401 = vrot.lane.b32.xlu0 %v287, 112
    %v1402 = vpop.permute.xlu0 %1401
    %1403 = vrot.lane.b32.xlu0 %v366, 112
    %v1404 = vpop.permute.xlu0 %1403
    %v1405 = vsel %vm442, %v1402, 0
    %v1407 = vsel %vm442, %v1404, 0
    %1409 = vmatprep.subr.mxu0 0.0
    %1410 = vmatpush1.xpose.msra.mxu0 %v1407
    %1411 = vmatprep.subr.mxu0 0.0
    %1412 = vmatpush1.xpose.msra.mxu0 0.0
    %1413 = vmatprep.subr.mxu0 0.0
    %1414 = vmatpush1.xpose.msra.mxu0 0.0
    %1415 = vmatprep.subr.mxu0 0.0
    %1416 = vmatpush1.xpose.msra.mxu0 0.0
    %1417 = vmatprep.subr.mxu0 0.0
    %1418 = vmatpush1.xpose.msra.mxu0 0.0
    %1419 = vmatprep.subr.mxu0 0.0
    %1420 = vmatpush1.xpose.msra.mxu0 0.0
    %1421 = vmatprep.subr.mxu0 0.0
    %1422 = vmatpush1.xpose.msra.mxu0 0.0
    %1423 = vmatprep.subr.mxu0 0.0
    %1424 = vmatpush1.xpose.msra.mxu0 0.0
    %1425 = vmatprep.subr.mxu0 0.0
    %1426 = vmatpush1.xpose.msra.mxu0 0.0
    %1427 = vmatprep.subr.mxu0 0.0
    %1428 = vmatpush1.xpose.msra.mxu0 0.0
    %1429 = vmatprep.subr.mxu0 0.0
    %1430 = vmatpush1.xpose.msra.mxu0 0.0
    %1431 = vmatprep.subr.mxu0 0.0
    %1432 = vmatpush1.xpose.msra.mxu0 0.0
    %1433 = vmatprep.subr.mxu0 0.0
    %1434 = vmatpush1.xpose.msra.mxu0 0.0
    %1435 = vmatprep.subr.mxu0 0.0
    %1436 = vmatpush1.xpose.msra.mxu0 0.0
    %1437 = vmatprep.subr.mxu0 0.0
    %1438 = vmatpush1.xpose.msra.mxu0 0.0
    %1439 = vmatprep.subr.mxu0 0.0
    %1440 = vmatpush1.xpose.msra.mxu0 0.0
    %1441 = vmatprep.subr.mxu0 0.0
    %1442 = vmatpush1.xpose.msra.mxu0 0.0
    %1443 = vmatprep.subr.mxu0 0.0
    %1444 = vmatpush1.xpose.msra.mxu0 0.0
    %1445 = vmatprep.subr.mxu0 0.0
    %1446 = vmatpush1.xpose.msra.mxu0 0.0
    %1447 = vmatprep.subr.mxu0 0.0
    %1448 = vmatpush1.xpose.msra.mxu0 0.0
    %1449 = vmatprep.subr.mxu0 0.0
    %1450 = vmatpush1.xpose.msra.mxu0 0.0
    %1451 = vmatprep.subr.mxu0 0.0
    %1452 = vmatpush1.xpose.msra.mxu0 0.0
    %1453 = vmatprep.subr.mxu0 0.0
    %1454 = vmatpush1.xpose.msra.mxu0 0.0
    %1455 = vmatprep.subr.mxu0 0.0
    %1456 = vmatpush1.xpose.msra.mxu0 0.0
    %1457 = vmatprep.subr.mxu0 0.0
    %1458 = vmatpush1.xpose.msra.mxu0 0.0
    %1459 = vmatprep.subr.mxu0 0.0
    %1460 = vmatpush1.xpose.msra.mxu0 0.0
    %1461 = vmatprep.subr.mxu0 0.0
    %1462 = vmatpush1.xpose.msra.mxu0 0.0
    %1463 = vmatprep.subr.mxu0 0.0
    %1464 = vmatpush1.xpose.msra.mxu0 0.0
    %1465 = vmatprep.subr.mxu0 0.0
    %1466 = vmatpush1.xpose.msra.mxu0 0.0
    %1467 = vmatprep.subr.mxu0 0.0
    %1468 = vmatpush1.xpose.msra.mxu0 0.0
    %1469 = vmatprep.subr.mxu0 0.0
    %1470 = vmatpush1.xpose.msra.mxu0 0.0
    %1471 = vmatprep.subr.mxu0 0.0
    %1472 = vmatpush1.xpose.msra.mxu0 0.0
    %1473 = vmatprep.mubr.f32.mxu0 0.0
    %1474 = vmatmul.mubr.f32.gmra.mrb[0].mxu0 %v1405
    %v1475 = vpop.f32.mrb[0].mxu0
    %v1476 = vadd.f32 0.0, %v1475
    %v1477 = vpop.f32.mrb[0].mxu0
    %1478 = vdwg.mxu0
    %1479 = vrot.lane.b32.xlu0 %v288, 112
    %v1480 = vpop.permute.xlu0 %1479
    %1481 = vrot.lane.b32.xlu0 %v439, 112
    %v1482 = vpop.permute.xlu0 %1481
    %v1483 = vsel %vm442, %v1480, 0
    %v1485 = vsel %vm442, %v1482, 0
    %1487 = vmatprep.subr.mxu0 0.0
    %1488 = vmatpush1.xpose.msra.mxu0 %v1485
    %1489 = vmatprep.subr.mxu0 0.0
    %1490 = vmatpush1.xpose.msra.mxu0 0.0
    %1491 = vmatprep.subr.mxu0 0.0
    %1492 = vmatpush1.xpose.msra.mxu0 0.0
    %1493 = vmatprep.subr.mxu0 0.0
    %1494 = vmatpush1.xpose.msra.mxu0 0.0
    %1495 = vmatprep.subr.mxu0 0.0
    %1496 = vmatpush1.xpose.msra.mxu0 0.0
    %1497 = vmatprep.subr.mxu0 0.0
    %1498 = vmatpush1.xpose.msra.mxu0 0.0
    %1499 = vmatprep.subr.mxu0 0.0
    %1500 = vmatpush1.xpose.msra.mxu0 0.0
    %1501 = vmatprep.subr.mxu0 0.0
    %1502 = vmatpush1.xpose.msra.mxu0 0.0
    %1503 = vmatprep.subr.mxu0 0.0
    %1504 = vmatpush1.xpose.msra.mxu0 0.0
    %1505 = vmatprep.subr.mxu0 0.0
    %1506 = vmatpush1.xpose.msra.mxu0 0.0
    %1507 = vmatprep.subr.mxu0 0.0
    %1508 = vmatpush1.xpose.msra.mxu0 0.0
    %1509 = vmatprep.subr.mxu0 0.0
    %1510 = vmatpush1.xpose.msra.mxu0 0.0
    %1511 = vmatprep.subr.mxu0 0.0
    %1512 = vmatpush1.xpose.msra.mxu0 0.0
    %1513 = vmatprep.subr.mxu0 0.0
    %1514 = vmatpush1.xpose.msra.mxu0 0.0
    %1515 = vmatprep.subr.mxu0 0.0
    %1516 = vmatpush1.xpose.msra.mxu0 0.0
    %1517 = vmatprep.subr.mxu0 0.0
    %1518 = vmatpush1.xpose.msra.mxu0 0.0
    %1519 = vmatprep.subr.mxu0 0.0
    %1520 = vmatpush1.xpose.msra.mxu0 0.0
    %1521 = vmatprep.subr.mxu0 0.0
    %1522 = vmatpush1.xpose.msra.mxu0 0.0
    %1523 = vmatprep.subr.mxu0 0.0
    %1524 = vmatpush1.xpose.msra.mxu0 0.0
    %1525 = vmatprep.subr.mxu0 0.0
    %1526 = vmatpush1.xpose.msra.mxu0 0.0
    %1527 = vmatprep.subr.mxu0 0.0
    %1528 = vmatpush1.xpose.msra.mxu0 0.0
    %1529 = vmatprep.subr.mxu0 0.0
    %1530 = vmatpush1.xpose.msra.mxu0 0.0
    %1531 = vmatprep.subr.mxu0 0.0
    %1532 = vmatpush1.xpose.msra.mxu0 0.0
    %1533 = vmatprep.subr.mxu0 0.0
    %1534 = vmatpush1.xpose.msra.mxu0 0.0
    %1535 = vmatprep.subr.mxu0 0.0
    %1536 = vmatpush1.xpose.msra.mxu0 0.0
    %1537 = vmatprep.subr.mxu0 0.0
    %1538 = vmatpush1.xpose.msra.mxu0 0.0
    %1539 = vmatprep.subr.mxu0 0.0
    %1540 = vmatpush1.xpose.msra.mxu0 0.0
    %1541 = vmatprep.subr.mxu0 0.0
    %1542 = vmatpush1.xpose.msra.mxu0 0.0
    %1543 = vmatprep.subr.mxu0 0.0
    %1544 = vmatpush1.xpose.msra.mxu0 0.0
    %1545 = vmatprep.subr.mxu0 0.0
    %1546 = vmatpush1.xpose.msra.mxu0 0.0
    %1547 = vmatprep.subr.mxu0 0.0
    %1548 = vmatpush1.xpose.msra.mxu0 0.0
    %1549 = vmatprep.subr.mxu0 0.0
    %1550 = vmatpush1.xpose.msra.mxu0 0.0
    %1551 = vmatprep.mubr.f32.mxu0 0.0
    %1552 = vmatmul.mubr.f32.gmra.mrb[0].mxu0 %v1483
    %v1553 = vpop.f32.mrb[0].mxu0
    %v1554 = vadd.f32 0.0, %v1553
    %v1555 = vpop.f32.mrb[0].mxu0
    %1556 = vdwg.mxu0
    %v1557 = vmul.f32 %v1476, %v119
    %v1558 = vmul.f32 %v1554, %v120
    %v1559 = vadd.f32 %v1557, %v123
    %v1560 = vadd.f32 %v1558, %v124
    %v1561 = vsel %vm442, %v1559, -inf
    %1562 = vmax.xlane.f32.xlu0 %v1561
    %v1563 = vpop.xlane.xlu0 %1562
    %v1564 = vsel %vm442, %v1560, -inf
    %1565 = vmax.xlane.f32.xlu0 %v1564
    %v1566 = vpop.xlane.xlu0 %1565
    %v1567 = vsub.f32 %v1559, %v1563
    %v1568 = vsub.f32 %v1560, %v1566
    %v1569 = vmul.f32 %v1567, 1.442695
    %v1570 = vpow.pop %v1569
    %v1571 = vmul.f32 %v1568, 1.442695
    %v1572 = vpow.pop %v1571
    %v1573 = vsel %vm442, %v1570, 0.0
    %1574 = vadd.xlane.f32.xlu0 %v1573
    %v1575 = vpop.xlane.xlu0 %1574
    %v1576 = vsel %vm442, %v1572, 0.0
    %1577 = vadd.xlane.f32.xlu0 %v1576
    %v1578 = vpop.xlane.xlu0 %1577
    %v1579 = vrcp.pop %v1575
    %v1580 = vrcp.pop %v1578
    %v1581 = vmul.f32 %v1570, %v1579
    %v1582 = vmul.f32 %v1572, %v1580
    %1583 = vrot.lane.b32.xlu0 %v366, 80
    %v1584 = vpop.permute.xlu0 %1583
    %v1587 = vsel %vm442, %v1581, 0
    %1589 = vmatprep.subr.mxu0 0.0
    %1590 = vmatpush1.msra.mxu0 %v1584
    %1591 = vmatprep.subr.mxu0 0.0
    %1592 = vmatpush1.msra.mxu0 0.0
    %1593 = vmatprep.subr.mxu0 0.0
    %1594 = vmatpush1.msra.mxu0 0.0
    %1595 = vmatprep.subr.mxu0 0.0
    %1596 = vmatpush1.msra.mxu0 0.0
    %1597 = vmatprep.subr.mxu0 0.0
    %1598 = vmatpush1.msra.mxu0 0.0
    %1599 = vmatprep.subr.mxu0 0.0
    %1600 = vmatpush1.msra.mxu0 0.0
    %1601 = vmatprep.subr.mxu0 0.0
    %1602 = vmatpush1.msra.mxu0 0.0
    %1603 = vmatprep.subr.mxu0 0.0
    %1604 = vmatpush1.msra.mxu0 0.0
    %1605 = vmatprep.subr.mxu0 0.0
    %1606 = vmatpush1.msra.mxu0 0.0
    %1607 = vmatprep.subr.mxu0 0.0
    %1608 = vmatpush1.msra.mxu0 0.0
    %1609 = vmatprep.subr.mxu0 0.0
    %1610 = vmatpush1.msra.mxu0 0.0
    %1611 = vmatprep.subr.mxu0 0.0
    %1612 = vmatpush1.msra.mxu0 0.0
    %1613 = vmatprep.subr.mxu0 0.0
    %1614 = vmatpush1.msra.mxu0 0.0
    %1615 = vmatprep.subr.mxu0 0.0
    %1616 = vmatpush1.msra.mxu0 0.0
    %1617 = vmatprep.subr.mxu0 0.0
    %1618 = vmatpush1.msra.mxu0 0.0
    %1619 = vmatprep.subr.mxu0 0.0
    %1620 = vmatpush1.msra.mxu0 0.0
    %1621 = vmatprep.subr.mxu0 0.0
    %1622 = vmatpush1.msra.mxu0 0.0
    %1623 = vmatprep.subr.mxu0 0.0
    %1624 = vmatpush1.msra.mxu0 0.0
    %1625 = vmatprep.subr.mxu0 0.0
    %1626 = vmatpush1.msra.mxu0 0.0
    %1627 = vmatprep.subr.mxu0 0.0
    %1628 = vmatpush1.msra.mxu0 0.0
    %1629 = vmatprep.subr.mxu0 0.0
    %1630 = vmatpush1.msra.mxu0 0.0
    %1631 = vmatprep.subr.mxu0 0.0
    %1632 = vmatpush1.msra.mxu0 0.0
    %1633 = vmatprep.subr.mxu0 0.0
    %1634 = vmatpush1.msra.mxu0 0.0
    %1635 = vmatprep.subr.mxu0 0.0
    %1636 = vmatpush1.msra.mxu0 0.0
    %1637 = vmatprep.subr.mxu0 0.0
    %1638 = vmatpush1.msra.mxu0 0.0
    %1639 = vmatprep.subr.mxu0 0.0
    %1640 = vmatpush1.msra.mxu0 0.0
    %1641 = vmatprep.subr.mxu0 0.0
    %1642 = vmatpush1.msra.mxu0 0.0
    %1643 = vmatprep.subr.mxu0 0.0
    %1644 = vmatpush1.msra.mxu0 0.0
    %1645 = vmatprep.subr.mxu0 0.0
    %1646 = vmatpush1.msra.mxu0 0.0
    %1647 = vmatprep.subr.mxu0 0.0
    %1648 = vmatpush1.msra.mxu0 0.0
    %1649 = vmatprep.subr.mxu0 0.0
    %1650 = vmatpush1.msra.mxu0 0.0
    %1651 = vmatprep.subr.mxu0 0.0
    %1652 = vmatpush1.msra.mxu0 0.0
    %1653 = vmatprep.mubr.f32.mxu0 0.0
    %1654 = vmatmul.mubr.f32.gmra.mrb[0].mxu0 %v1587
    %v1655 = vpop.f32.mrb[0].mxu0
    %v1656 = vadd.f32 0.0, %v1655
    %v1657 = vpop.f32.mrb[0].mxu0
    %1658 = vdwg.mxu0
    %1659 = vrot.lane.b32.xlu0 %v439, 80
    %v1660 = vpop.permute.xlu0 %1659
    %v1663 = vsel %vm442, %v1582, 0
    %1665 = vmatprep.subr.mxu0 0.0
    %1666 = vmatpush1.msra.mxu0 %v1660
    %1667 = vmatprep.subr.mxu0 0.0
    %1668 = vmatpush1.msra.mxu0 0.0
    %1669 = vmatprep.subr.mxu0 0.0
    %1670 = vmatpush1.msra.mxu0 0.0
    %1671 = vmatprep.subr.mxu0 0.0
    %1672 = vmatpush1.msra.mxu0 0.0
    %1673 = vmatprep.subr.mxu0 0.0
    %1674 = vmatpush1.msra.mxu0 0.0
    %1675 = vmatprep.subr.mxu0 0.0
    %1676 = vmatpush1.msra.mxu0 0.0
    %1677 = vmatprep.subr.mxu0 0.0
    %1678 = vmatpush1.msra.mxu0 0.0
    %1679 = vmatprep.subr.mxu0 0.0
    %1680 = vmatpush1.msra.mxu0 0.0
    %1681 = vmatprep.subr.mxu0 0.0
    %1682 = vmatpush1.msra.mxu0 0.0
    %1683 = vmatprep.subr.mxu0 0.0
    %1684 = vmatpush1.msra.mxu0 0.0
    %1685 = vmatprep.subr.mxu0 0.0
    %1686 = vmatpush1.msra.mxu0 0.0
    %1687 = vmatprep.subr.mxu0 0.0
    %1688 = vmatpush1.msra.mxu0 0.0
    %1689 = vmatprep.subr.mxu0 0.0
    %1690 = vmatpush1.msra.mxu0 0.0
    %1691 = vmatprep.subr.mxu0 0.0
    %1692 = vmatpush1.msra.mxu0 0.0
    %1693 = vmatprep.subr.mxu0 0.0
    %1694 = vmatpush1.msra.mxu0 0.0
    %1695 = vmatprep.subr.mxu0 0.0
    %1696 = vmatpush1.msra.mxu0 0.0
    %1697 = vmatprep.subr.mxu0 0.0
    %1698 = vmatpush1.msra.mxu0 0.0
    %1699 = vmatprep.subr.mxu0 0.0
    %1700 = vmatpush1.msra.mxu0 0.0
    %1701 = vmatprep.subr.mxu0 0.0
    %1702 = vmatpush1.msra.mxu0 0.0
    %1703 = vmatprep.subr.mxu0 0.0
    %1704 = vmatpush1.msra.mxu0 0.0
    %1705 = vmatprep.subr.mxu0 0.0
    %1706 = vmatpush1.msra.mxu0 0.0
    %1707 = vmatprep.subr.mxu0 0.0
    %1708 = vmatpush1.msra.mxu0 0.0
    %1709 = vmatprep.subr.mxu0 0.0
    %1710 = vmatpush1.msra.mxu0 0.0
    %1711 = vmatprep.subr.mxu0 0.0
    %1712 = vmatpush1.msra.mxu0 0.0
    %1713 = vmatprep.subr.mxu0 0.0
    %1714 = vmatpush1.msra.mxu0 0.0
    %1715 = vmatprep.subr.mxu0 0.0
    %1716 = vmatpush1.msra.mxu0 0.0
    %1717 = vmatprep.subr.mxu0 0.0
    %1718 = vmatpush1.msra.mxu0 0.0
    %1719 = vmatprep.subr.mxu0 0.0
    %1720 = vmatpush1.msra.mxu0 0.0
    %1721 = vmatprep.subr.mxu0 0.0
    %1722 = vmatpush1.msra.mxu0 0.0
    %1723 = vmatprep.subr.mxu0 0.0
    %1724 = vmatpush1.msra.mxu0 0.0
    %1725 = vmatprep.subr.mxu0 0.0
    %1726 = vmatpush1.msra.mxu0 0.0
    %1727 = vmatprep.subr.mxu0 0.0
    %1728 = vmatpush1.msra.mxu0 0.0
    %1729 = vmatprep.mubr.f32.mxu0 0.0
    %1730 = vmatmul.mubr.f32.gmra.mrb[0].mxu0 %v1663
    %v1731 = vpop.f32.mrb[0].mxu0
    %v1732 = vadd.f32 0.0, %v1731
    %v1733 = vpop.f32.mrb[0].mxu0
    %1734 = vdwg.mxu0
    %v1735 = vld [vmem:[#allocation11 + $0x10] sm:$0xff]
    %v1737 = vsel %vm442, %v1656, 0
    %1739 = vmatprep.subr.mxu0 0.0
    %1740 = vmatpush1.msra.mxu0 %v1735
    %1741 = vmatprep.subr.mxu0 0.0
    %1742 = vmatpush1.msra.mxu0 0.0
    %1743 = vmatprep.subr.mxu0 0.0
    %1744 = vmatpush1.msra.mxu0 0.0
    %1745 = vmatprep.subr.mxu0 0.0
    %1746 = vmatpush1.msra.mxu0 0.0
    %1747 = vmatprep.subr.mxu0 0.0
    %1748 = vmatpush1.msra.mxu0 0.0
    %1749 = vmatprep.subr.mxu0 0.0
    %1750 = vmatpush1.msra.mxu0 0.0
    %1751 = vmatprep.subr.mxu0 0.0
    %1752 = vmatpush1.msra.mxu0 0.0
    %1753 = vmatprep.subr.mxu0 0.0
    %1754 = vmatpush1.msra.mxu0 0.0
    %1755 = vmatprep.subr.mxu0 0.0
    %1756 = vmatpush1.msra.mxu0 0.0
    %1757 = vmatprep.subr.mxu0 0.0
    %1758 = vmatpush1.msra.mxu0 0.0
    %1759 = vmatprep.subr.mxu0 0.0
    %1760 = vmatpush1.msra.mxu0 0.0
    %1761 = vmatprep.subr.mxu0 0.0
    %1762 = vmatpush1.msra.mxu0 0.0
    %1763 = vmatprep.subr.mxu0 0.0
    %1764 = vmatpush1.msra.mxu0 0.0
    %1765 = vmatprep.subr.mxu0 0.0
    %1766 = vmatpush1.msra.mxu0 0.0
    %1767 = vmatprep.subr.mxu0 0.0
    %1768 = vmatpush1.msra.mxu0 0.0
    %1769 = vmatprep.subr.mxu0 0.0
    %1770 = vmatpush1.msra.mxu0 0.0
    %1771 = vmatprep.subr.mxu0 0.0
    %1772 = vmatpush1.msra.mxu0 0.0
    %1773 = vmatprep.subr.mxu0 0.0
    %1774 = vmatpush1.msra.mxu0 0.0
    %1775 = vmatprep.subr.mxu0 0.0
    %1776 = vmatpush1.msra.mxu0 0.0
    %1777 = vmatprep.subr.mxu0 0.0
    %1778 = vmatpush1.msra.mxu0 0.0
    %1779 = vmatprep.subr.mxu0 0.0
    %1780 = vmatpush1.msra.mxu0 0.0
    %1781 = vmatprep.subr.mxu0 0.0
    %1782 = vmatpush1.msra.mxu0 0.0
    %1783 = vmatprep.subr.mxu0 0.0
    %1784 = vmatpush1.msra.mxu0 0.0
    %1785 = vmatprep.subr.mxu0 0.0
    %1786 = vmatpush1.msra.mxu0 0.0
    %1787 = vmatprep.subr.mxu0 0.0
    %1788 = vmatpush1.msra.mxu0 0.0
    %1789 = vmatprep.subr.mxu0 0.0
    %1790 = vmatpush1.msra.mxu0 0.0
    %1791 = vmatprep.subr.mxu0 0.0
    %1792 = vmatpush1.msra.mxu0 0.0
    %1793 = vmatprep.subr.mxu0 0.0
    %1794 = vmatpush1.msra.mxu0 0.0
    %1795 = vmatprep.subr.mxu0 0.0
    %1796 = vmatpush1.msra.mxu0 0.0
    %1797 = vmatprep.subr.mxu0 0.0
    %1798 = vmatpush1.msra.mxu0 0.0
    %1799 = vmatprep.subr.mxu0 0.0
    %1800 = vmatpush1.msra.mxu0 0.0
    %1801 = vmatprep.subr.mxu0 0.0
    %1802 = vmatpush1.msra.mxu0 0.0
    %1803 = vmatprep.mubr.f32.mxu0 0.0
    %1804 = vmatmul.mubr.f32.gmra.mrb[0].mxu0 %v1737
    %v1805 = vpop.f32.mrb[0].mxu0
    %v1806 = vadd.f32 0.0, %v1805
    %v1807 = vpop.f32.mrb[0].mxu0
    %1808 = vdwg.mxu0
    %v1810 = vsel %vm442, %v1732, 0
    %1812 = vmatprep.subr.mxu0 0.0
    %1813 = vmatpush1.msra.mxu0 %v1735
    %1814 = vmatprep.subr.mxu0 0.0
    %1815 = vmatpush1.msra.mxu0 0.0
    %1816 = vmatprep.subr.mxu0 0.0
    %1817 = vmatpush1.msra.mxu0 0.0
    %1818 = vmatprep.subr.mxu0 0.0
    %1819 = vmatpush1.msra.mxu0 0.0
    %1820 = vmatprep.subr.mxu0 0.0
    %1821 = vmatpush1.msra.mxu0 0.0
    %1822 = vmatprep.subr.mxu0 0.0
    %1823 = vmatpush1.msra.mxu0 0.0
    %1824 = vmatprep.subr.mxu0 0.0
    %1825 = vmatpush1.msra.mxu0 0.0
    %1826 = vmatprep.subr.mxu0 0.0
    %1827 = vmatpush1.msra.mxu0 0.0
    %1828 = vmatprep.subr.mxu0 0.0
    %1829 = vmatpush1.msra.mxu0 0.0
    %1830 = vmatprep.subr.mxu0 0.0
    %1831 = vmatpush1.msra.mxu0 0.0
    %1832 = vmatprep.subr.mxu0 0.0
    %1833 = vmatpush1.msra.mxu0 0.0
    %1834 = vmatprep.subr.mxu0 0.0
    %1835 = vmatpush1.msra.mxu0 0.0
    %1836 = vmatprep.subr.mxu0 0.0
    %1837 = vmatpush1.msra.mxu0 0.0
    %1838 = vmatprep.subr.mxu0 0.0
    %1839 = vmatpush1.msra.mxu0 0.0
    %1840 = vmatprep.subr.mxu0 0.0
    %1841 = vmatpush1.msra.mxu0 0.0
    %1842 = vmatprep.subr.mxu0 0.0
    %1843 = vmatpush1.msra.mxu0 0.0
    %1844 = vmatprep.subr.mxu0 0.0
    %1845 = vmatpush1.msra.mxu0 0.0
    %1846 = vmatprep.subr.mxu0 0.0
    %1847 = vmatpush1.msra.mxu0 0.0
    %1848 = vmatprep.subr.mxu0 0.0
    %1849 = vmatpush1.msra.mxu0 0.0
    %1850 = vmatprep.subr.mxu0 0.0
    %1851 = vmatpush1.msra.mxu0 0.0
    %1852 = vmatprep.subr.mxu0 0.0
    %1853 = vmatpush1.msra.mxu0 0.0
    %1854 = vmatprep.subr.mxu0 0.0
    %1855 = vmatpush1.msra.mxu0 0.0
    %1856 = vmatprep.subr.mxu0 0.0
    %1857 = vmatpush1.msra.mxu0 0.0
    %1858 = vmatprep.subr.mxu0 0.0
    %1859 = vmatpush1.msra.mxu0 0.0
    %1860 = vmatprep.subr.mxu0 0.0
    %1861 = vmatpush1.msra.mxu0 0.0
    %1862 = vmatprep.subr.mxu0 0.0
    %1863 = vmatpush1.msra.mxu0 0.0
    %1864 = vmatprep.subr.mxu0 0.0
    %1865 = vmatpush1.msra.mxu0 0.0
    %1866 = vmatprep.subr.mxu0 0.0
    %1867 = vmatpush1.msra.mxu0 0.0
    %1868 = vmatprep.subr.mxu0 0.0
    %1869 = vmatpush1.msra.mxu0 0.0
    %1870 = vmatprep.subr.mxu0 0.0
    %1871 = vmatpush1.msra.mxu0 0.0
    %1872 = vmatprep.subr.mxu0 0.0
    %1873 = vmatpush1.msra.mxu0 0.0
    %1874 = vmatprep.subr.mxu0 0.0
    %1875 = vmatpush1.msra.mxu0 0.0
    %1876 = vmatprep.mubr.f32.mxu0 0.0
    %1877 = vmatmul.mubr.f32.gmra.mrb[0].mxu0 %v1810
    %v1878 = vpop.f32.mrb[0].mxu0
    %v1879 = vadd.f32 0.0, %v1878
    %v1880 = vpop.f32.mrb[0].mxu0
    %1881 = vdwg.mxu0
    %v1882 = vadd.f32 %v1325, %v1806
    %v1883 = vadd.f32 %v1398, %v1879
    %1884 = vrot.lane.b32.xlu0 %v287, 104
    %v1885 = vpop.permute.xlu0 %1884
    %1886 = vrot.lane.b32.xlu0 %v366, 104
    %v1887 = vpop.permute.xlu0 %1886
    %v1888 = vsel %vm442, %v1885, 0
    %v1890 = vsel %vm442, %v1887, 0
    %1892 = vmatprep.subr.mxu0 0.0
    %1893 = vmatpush1.xpose.msra.mxu0 %v1890
    %1894 = vmatprep.subr.mxu0 0.0
    %1895 = vmatpush1.xpose.msra.mxu0 0.0
    %1896 = vmatprep.subr.mxu0 0.0
    %1897 = vmatpush1.xpose.msra.mxu0 0.0
    %1898 = vmatprep.subr.mxu0 0.0
    %1899 = vmatpush1.xpose.msra.mxu0 0.0
    %1900 = vmatprep.subr.mxu0 0.0
    %1901 = vmatpush1.xpose.msra.mxu0 0.0
    %1902 = vmatprep.subr.mxu0 0.0
    %1903 = vmatpush1.xpose.msra.mxu0 0.0
    %1904 = vmatprep.subr.mxu0 0.0
    %1905 = vmatpush1.xpose.msra.mxu0 0.0
    %1906 = vmatprep.subr.mxu0 0.0
    %1907 = vmatpush1.xpose.msra.mxu0 0.0
    %1908 = vmatprep.subr.mxu0 0.0
    %1909 = vmatpush1.xpose.msra.mxu0 0.0
    %1910 = vmatprep.subr.mxu0 0.0
    %1911 = vmatpush1.xpose.msra.mxu0 0.0
    %1912 = vmatprep.subr.mxu0 0.0
    %1913 = vmatpush1.xpose.msra.mxu0 0.0
    %1914 = vmatprep.subr.mxu0 0.0
    %1915 = vmatpush1.xpose.msra.mxu0 0.0
    %1916 = vmatprep.subr.mxu0 0.0
    %1917 = vmatpush1.xpose.msra.mxu0 0.0
    %1918 = vmatprep.subr.mxu0 0.0
    %1919 = vmatpush1.xpose.msra.mxu0 0.0
    %1920 = vmatprep.subr.mxu0 0.0
    %1921 = vmatpush1.xpose.msra.mxu0 0.0
    %1922 = vmatprep.subr.mxu0 0.0
    %1923 = vmatpush1.xpose.msra.mxu0 0.0
    %1924 = vmatprep.subr.mxu0 0.0
    %1925 = vmatpush1.xpose.msra.mxu0 0.0
    %1926 = vmatprep.subr.mxu0 0.0
    %1927 = vmatpush1.xpose.msra.mxu0 0.0
    %1928 = vmatprep.subr.mxu0 0.0
    %1929 = vmatpush1.xpose.msra.mxu0 0.0
    %1930 = vmatprep.subr.mxu0 0.0
    %1931 = vmatpush1.xpose.msra.mxu0 0.0
    %1932 = vmatprep.subr.mxu0 0.0
    %1933 = vmatpush1.xpose.msra.mxu0 0.0
    %1934 = vmatprep.subr.mxu0 0.0
    %1935 = vmatpush1.xpose.msra.mxu0 0.0
    %1936 = vmatprep.subr.mxu0 0.0
    %1937 = vmatpush1.xpose.msra.mxu0 0.0
    %1938 = vmatprep.subr.mxu0 0.0
    %1939 = vmatpush1.xpose.msra.mxu0 0.0
    %1940 = vmatprep.subr.mxu0 0.0
    %1941 = vmatpush1.xpose.msra.mxu0 0.0
    %1942 = vmatprep.subr.mxu0 0.0
    %1943 = vmatpush1.xpose.msra.mxu0 0.0
    %1944 = vmatprep.subr.mxu0 0.0
    %1945 = vmatpush1.xpose.msra.mxu0 0.0
    %1946 = vmatprep.subr.mxu0 0.0
    %1947 = vmatpush1.xpose.msra.mxu0 0.0
    %1948 = vmatprep.subr.mxu0 0.0
    %1949 = vmatpush1.xpose.msra.mxu0 0.0
    %1950 = vmatprep.subr.mxu0 0.0
    %1951 = vmatpush1.xpose.msra.mxu0 0.0
    %1952 = vmatprep.subr.mxu0 0.0
    %1953 = vmatpush1.xpose.msra.mxu0 0.0
    %1954 = vmatprep.subr.mxu0 0.0
    %1955 = vmatpush1.xpose.msra.mxu0 0.0
    %1956 = vmatprep.mubr.f32.mxu0 0.0
    %1957 = vmatmul.mubr.f32.gmra.mrb[0].mxu0 %v1888
    %v1958 = vpop.f32.mrb[0].mxu0
    %v1959 = vadd.f32 0.0, %v1958
    %v1960 = vpop.f32.mrb[0].mxu0
    %1961 = vdwg.mxu0
    %1962 = vrot.lane.b32.xlu0 %v288, 104
    %v1963 = vpop.permute.xlu0 %1962
    %1964 = vrot.lane.b32.xlu0 %v439, 104
    %v1965 = vpop.permute.xlu0 %1964
    %v1966 = vsel %vm442, %v1963, 0
    %v1968 = vsel %vm442, %v1965, 0
    %1970 = vmatprep.subr.mxu0 0.0
    %1971 = vmatpush1.xpose.msra.mxu0 %v1968
    %1972 = vmatprep.subr.mxu0 0.0
    %1973 = vmatpush1.xpose.msra.mxu0 0.0
    %1974 = vmatprep.subr.mxu0 0.0
    %1975 = vmatpush1.xpose.msra.mxu0 0.0
    %1976 = vmatprep.subr.mxu0 0.0
    %1977 = vmatpush1.xpose.msra.mxu0 0.0
    %1978 = vmatprep.subr.mxu0 0.0
    %1979 = vmatpush1.xpose.msra.mxu0 0.0
    %1980 = vmatprep.subr.mxu0 0.0
    %1981 = vmatpush1.xpose.msra.mxu0 0.0
    %1982 = vmatprep.subr.mxu0 0.0
    %1983 = vmatpush1.xpose.msra.mxu0 0.0
    %1984 = vmatprep.subr.mxu0 0.0
    %1985 = vmatpush1.xpose.msra.mxu0 0.0
    %1986 = vmatprep.subr.mxu0 0.0
    %1987 = vmatpush1.xpose.msra.mxu0 0.0
    %1988 = vmatprep.subr.mxu0 0.0
    %1989 = vmatpush1.xpose.msra.mxu0 0.0
    %1990 = vmatprep.subr.mxu0 0.0
    %1991 = vmatpush1.xpose.msra.mxu0 0.0
    %1992 = vmatprep.subr.mxu0 0.0
    %1993 = vmatpush1.xpose.msra.mxu0 0.0
    %1994 = vmatprep.subr.mxu0 0.0
    %1995 = vmatpush1.xpose.msra.mxu0 0.0
    %1996 = vmatprep.subr.mxu0 0.0
    %1997 = vmatpush1.xpose.msra.mxu0 0.0
    %1998 = vmatprep.subr.mxu0 0.0
    %1999 = vmatpush1.xpose.msra.mxu0 0.0
    %2000 = vmatprep.subr.mxu0 0.0
    %2001 = vmatpush1.xpose.msra.mxu0 0.0
    %2002 = vmatprep.subr.mxu0 0.0
    %2003 = vmatpush1.xpose.msra.mxu0 0.0
    %2004 = vmatprep.subr.mxu0 0.0
    %2005 = vmatpush1.xpose.msra.mxu0 0.0
    %2006 = vmatprep.subr.mxu0 0.0
    %2007 = vmatpush1.xpose.msra.mxu0 0.0
    %2008 = vmatprep.subr.mxu0 0.0
    %2009 = vmatpush1.xpose.msra.mxu0 0.0
    %2010 = vmatprep.subr.mxu0 0.0
    %2011 = vmatpush1.xpose.msra.mxu0 0.0
    %2012 = vmatprep.subr.mxu0 0.0
    %2013 = vmatpush1.xpose.msra.mxu0 0.0
    %2014 = vmatprep.subr.mxu0 0.0
    %2015 = vmatpush1.xpose.msra.mxu0 0.0
    %2016 = vmatprep.subr.mxu0 0.0
    %2017 = vmatpush1.xpose.msra.mxu0 0.0
    %2018 = vmatprep.subr.mxu0 0.0
    %2019 = vmatpush1.xpose.msra.mxu0 0.0
    %2020 = vmatprep.subr.mxu0 0.0
    %2021 = vmatpush1.xpose.msra.mxu0 0.0
    %2022 = vmatprep.subr.mxu0 0.0
    %2023 = vmatpush1.xpose.msra.mxu0 0.0
    %2024 = vmatprep.subr.mxu0 0.0
    %2025 = vmatpush1.xpose.msra.mxu0 0.0
    %2026 = vmatprep.subr.mxu0 0.0
    %2027 = vmatpush1.xpose.msra.mxu0 0.0
    %2028 = vmatprep.subr.mxu0 0.0
    %2029 = vmatpush1.xpose.msra.mxu0 0.0
    %2030 = vmatprep.subr.mxu0 0.0
    %2031 = vmatpush1.xpose.msra.mxu0 0.0
    %2032 = vmatprep.subr.mxu0 0.0
    %2033 = vmatpush1.xpose.msra.mxu0 0.0
    %2034 = vmatprep.mubr.f32.mxu0 0.0
    %2035 = vmatmul.mubr.f32.gmra.mrb[0].mxu0 %v1966
    %v2036 = vpop.f32.mrb[0].mxu0
    %v2037 = vadd.f32 0.0, %v2036
    %v2038 = vpop.f32.mrb[0].mxu0
    %2039 = vdwg.mxu0
    %v2040 = vmul.f32 %v1959, %v119
    %v2041 = vmul.f32 %v2037, %v120
    %v2042 = vadd.f32 %v2040, %v123
    %v2043 = vadd.f32 %v2041, %v124
    %v2044 = vsel %vm442, %v2042, -inf
    %2045 = vmax.xlane.f32.xlu0 %v2044
    %v2046 = vpop.xlane.xlu0 %2045
    %v2047 = vsel %vm442, %v2043, -inf
    %2048 = vmax.xlane.f32.xlu0 %v2047
    %v2049 = vpop.xlane.xlu0 %2048
    %v2050 = vsub.f32 %v2042, %v2046
    %v2051 = vsub.f32 %v2043, %v2049
    %v2052 = vmul.f32 %v2050, 1.442695
    %v2053 = vpow.pop %v2052
    %v2054 = vmul.f32 %v2051, 1.442695
    %v2055 = vpow.pop %v2054
    %v2056 = vsel %vm442, %v2053, 0.0
    %2057 = vadd.xlane.f32.xlu0 %v2056
    %v2058 = vpop.xlane.xlu0 %2057
    %v2059 = vsel %vm442, %v2055, 0.0
    %2060 = vadd.xlane.f32.xlu0 %v2059
    %v2061 = vpop.xlane.xlu0 %2060
    %v2062 = vrcp.pop %v2058
    %v2063 = vrcp.pop %v2061
    %v2064 = vmul.f32 %v2053, %v2062
    %v2065 = vmul.f32 %v2055, %v2063
    %2066 = vrot.lane.b32.xlu0 %v366, 72
    %v2067 = vpop.permute.xlu0 %2066
    %v2070 = vsel %vm442, %v2064, 0
    %2072 = vmatprep.subr.mxu0 0.0
    %2073 = vmatpush1.msra.mxu0 %v2067
    %2074 = vmatprep.subr.mxu0 0.0
    %2075 = vmatpush1.msra.mxu0 0.0
    %2076 = vmatprep.subr.mxu0 0.0
    %2077 = vmatpush1.msra.mxu0 0.0
    %2078 = vmatprep.subr.mxu0 0.0
    %2079 = vmatpush1.msra.mxu0 0.0
    %2080 = vmatprep.subr.mxu0 0.0
    %2081 = vmatpush1.msra.mxu0 0.0
    %2082 = vmatprep.subr.mxu0 0.0
    %2083 = vmatpush1.msra.mxu0 0.0
    %2084 = vmatprep.subr.mxu0 0.0
    %2085 = vmatpush1.msra.mxu0 0.0
    %2086 = vmatprep.subr.mxu0 0.0
    %2087 = vmatpush1.msra.mxu0 0.0
    %2088 = vmatprep.subr.mxu0 0.0
    %2089 = vmatpush1.msra.mxu0 0.0
    %2090 = vmatprep.subr.mxu0 0.0
    %2091 = vmatpush1.msra.mxu0 0.0
    %2092 = vmatprep.subr.mxu0 0.0
    %2093 = vmatpush1.msra.mxu0 0.0
    %2094 = vmatprep.subr.mxu0 0.0
    %2095 = vmatpush1.msra.mxu0 0.0
    %2096 = vmatprep.subr.mxu0 0.0
    %2097 = vmatpush1.msra.mxu0 0.0
    %2098 = vmatprep.subr.mxu0 0.0
    %2099 = vmatpush1.msra.mxu0 0.0
    %2100 = vmatprep.subr.mxu0 0.0
    %2101 = vmatpush1.msra.mxu0 0.0
    %2102 = vmatprep.subr.mxu0 0.0
    %2103 = vmatpush1.msra.mxu0 0.0
    %2104 = vmatprep.subr.mxu0 0.0
    %2105 = vmatpush1.msra.mxu0 0.0
    %2106 = vmatprep.subr.mxu0 0.0
    %2107 = vmatpush1.msra.mxu0 0.0
    %2108 = vmatprep.subr.mxu0 0.0
    %2109 = vmatpush1.msra.mxu0 0.0
    %2110 = vmatprep.subr.mxu0 0.0
    %2111 = vmatpush1.msra.mxu0 0.0
    %2112 = vmatprep.subr.mxu0 0.0
    %2113 = vmatpush1.msra.mxu0 0.0
    %2114 = vmatprep.subr.mxu0 0.0
    %2115 = vmatpush1.msra.mxu0 0.0
    %2116 = vmatprep.subr.mxu0 0.0
    %2117 = vmatpush1.msra.mxu0 0.0
    %2118 = vmatprep.subr.mxu0 0.0
    %2119 = vmatpush1.msra.mxu0 0.0
    %2120 = vmatprep.subr.mxu0 0.0
    %2121 = vmatpush1.msra.mxu0 0.0
    %2122 = vmatprep.subr.mxu0 0.0
    %2123 = vmatpush1.msra.mxu0 0.0
    %2124 = vmatprep.subr.mxu0 0.0
    %2125 = vmatpush1.msra.mxu0 0.0
    %2126 = vmatprep.subr.mxu0 0.0
    %2127 = vmatpush1.msra.mxu0 0.0
    %2128 = vmatprep.subr.mxu0 0.0
    %2129 = vmatpush1.msra.mxu0 0.0
    %2130 = vmatprep.subr.mxu0 0.0
    %2131 = vmatpush1.msra.mxu0 0.0
    %2132 = vmatprep.subr.mxu0 0.0
    %2133 = vmatpush1.msra.mxu0 0.0
    %2134 = vmatprep.subr.mxu0 0.0
    %2135 = vmatpush1.msra.mxu0 0.0
    %2136 = vmatprep.mubr.f32.mxu0 0.0
    %2137 = vmatmul.mubr.f32.gmra.mrb[0].mxu0 %v2070
    %v2138 = vpop.f32.mrb[0].mxu0
    %v2139 = vadd.f32 0.0, %v2138
    %v2140 = vpop.f32.mrb[0].mxu0
    %2141 = vdwg.mxu0
    %2142 = vrot.lane.b32.xlu0 %v439, 72
    %v2143 = vpop.permute.xlu0 %2142
    %v2146 = vsel %vm442, %v2065, 0
    %2148 = vmatprep.subr.mxu0 0.0
    %2149 = vmatpush1.msra.mxu0 %v2143
    %2150 = vmatprep.subr.mxu0 0.0
    %2151 = vmatpush1.msra.mxu0 0.0
    %2152 = vmatprep.subr.mxu0 0.0
    %2153 = vmatpush1.msra.mxu0 0.0
    %2154 = vmatprep.subr.mxu0 0.0
    %2155 = vmatpush1.msra.mxu0 0.0
    %2156 = vmatprep.subr.mxu0 0.0
    %2157 = vmatpush1.msra.mxu0 0.0
    %2158 = vmatprep.subr.mxu0 0.0
    %2159 = vmatpush1.msra.mxu0 0.0
    %2160 = vmatprep.subr.mxu0 0.0
    %2161 = vmatpush1.msra.mxu0 0.0
    %2162 = vmatprep.subr.mxu0 0.0
    %2163 = vmatpush1.msra.mxu0 0.0
    %2164 = vmatprep.subr.mxu0 0.0
    %2165 = vmatpush1.msra.mxu0 0.0
    %2166 = vmatprep.subr.mxu0 0.0
    %2167 = vmatpush1.msra.mxu0 0.0
    %2168 = vmatprep.subr.mxu0 0.0
    %2169 = vmatpush1.msra.mxu0 0.0
    %2170 = vmatprep.subr.mxu0 0.0
    %2171 = vmatpush1.msra.mxu0 0.0
    %2172 = vmatprep.subr.mxu0 0.0
    %2173 = vmatpush1.msra.mxu0 0.0
    %2174 = vmatprep.subr.mxu0 0.0
    %2175 = vmatpush1.msra.mxu0 0.0
    %2176 = vmatprep.subr.mxu0 0.0
    %2177 = vmatpush1.msra.mxu0 0.0
    %2178 = vmatprep.subr.mxu0 0.0
    %2179 = vmatpush1.msra.mxu0 0.0
    %2180 = vmatprep.subr.mxu0 0.0
    %2181 = vmatpush1.msra.mxu0 0.0
    %2182 = vmatprep.subr.mxu0 0.0
    %2183 = vmatpush1.msra.mxu0 0.0
    %2184 = vmatprep.subr.mxu0 0.0
    %2185 = vmatpush1.msra.mxu0 0.0
    %2186 = vmatprep.subr.mxu0 0.0
    %2187 = vmatpush1.msra.mxu0 0.0
    %2188 = vmatprep.subr.mxu0 0.0
    %2189 = vmatpush1.msra.mxu0 0.0
    %2190 = vmatprep.subr.mxu0 0.0
    %2191 = vmatpush1.msra.mxu0 0.0
    %2192 = vmatprep.subr.mxu0 0.0
    %2193 = vmatpush1.msra.mxu0 0.0
    %2194 = vmatprep.subr.mxu0 0.0
    %2195 = vmatpush1.msra.mxu0 0.0
    %2196 = vmatprep.subr.mxu0 0.0
    %2197 = vmatpush1.msra.mxu0 0.0
    %2198 = vmatprep.subr.mxu0 0.0
    %2199 = vmatpush1.msra.mxu0 0.0
    %2200 = vmatprep.subr.mxu0 0.0
    %2201 = vmatpush1.msra.mxu0 0.0
    %2202 = vmatprep.subr.mxu0 0.0
    %2203 = vmatpush1.msra.mxu0 0.0
    %2204 = vmatprep.subr.mxu0 0.0
    %2205 = vmatpush1.msra.mxu0 0.0
    %2206 = vmatprep.subr.mxu0 0.0
    %2207 = vmatpush1.msra.mxu0 0.0
    %2208 = vmatprep.subr.mxu0 0.0
    %2209 = vmatpush1.msra.mxu0 0.0
    %2210 = vmatprep.subr.mxu0 0.0
    %2211 = vmatpush1.msra.mxu0 0.0
    %2212 = vmatprep.mubr.f32.mxu0 0.0
    %2213 = vmatmul.mubr.f32.gmra.mrb[0].mxu0 %v2146
    %v2214 = vpop.f32.mrb[0].mxu0
    %v2215 = vadd.f32 0.0, %v2214
    %v2216 = vpop.f32.mrb[0].mxu0
    %2217 = vdwg.mxu0
    %v2218 = vld [vmem:[#allocation11 + $0x18] sm:$0xff]
    %v2220 = vsel %vm442, %v2139, 0
    %2222 = vmatprep.subr.mxu0 0.0
    %2223 = vmatpush1.msra.mxu0 %v2218
    %2224 = vmatprep.subr.mxu0 0.0
    %2225 = vmatpush1.msra.mxu0 0.0
    %2226 = vmatprep.subr.mxu0 0.0
    %2227 = vmatpush1.msra.mxu0 0.0
    %2228 = vmatprep.subr.mxu0 0.0
    %2229 = vmatpush1.msra.mxu0 0.0
    %2230 = vmatprep.subr.mxu0 0.0
    %2231 = vmatpush1.msra.mxu0 0.0
    %2232 = vmatprep.subr.mxu0 0.0
    %2233 = vmatpush1.msra.mxu0 0.0
    %2234 = vmatprep.subr.mxu0 0.0
    %2235 = vmatpush1.msra.mxu0 0.0
    %2236 = vmatprep.subr.mxu0 0.0
    %2237 = vmatpush1.msra.mxu0 0.0
    %2238 = vmatprep.subr.mxu0 0.0
    %2239 = vmatpush1.msra.mxu0 0.0
    %2240 = vmatprep.subr.mxu0 0.0
    %2241 = vmatpush1.msra.mxu0 0.0
    %2242 = vmatprep.subr.mxu0 0.0
    %2243 = vmatpush1.msra.mxu0 0.0
    %2244 = vmatprep.subr.mxu0 0.0
    %2245 = vmatpush1.msra.mxu0 0.0
    %2246 = vmatprep.subr.mxu0 0.0
    %2247 = vmatpush1.msra.mxu0 0.0
    %2248 = vmatprep.subr.mxu0 0.0
    %2249 = vmatpush1.msra.mxu0 0.0
    %2250 = vmatprep.subr.mxu0 0.0
    %2251 = vmatpush1.msra.mxu0 0.0
    %2252 = vmatprep.subr.mxu0 0.0
    %2253 = vmatpush1.msra.mxu0 0.0
    %2254 = vmatprep.subr.mxu0 0.0
    %2255 = vmatpush1.msra.mxu0 0.0
    %2256 = vmatprep.subr.mxu0 0.0
    %2257 = vmatpush1.msra.mxu0 0.0
    %2258 = vmatprep.subr.mxu0 0.0
    %2259 = vmatpush1.msra.mxu0 0.0
    %2260 = vmatprep.subr.mxu0 0.0
    %2261 = vmatpush1.msra.mxu0 0.0
    %2262 = vmatprep.subr.mxu0 0.0
    %2263 = vmatpush1.msra.mxu0 0.0
    %2264 = vmatprep.subr.mxu0 0.0
    %2265 = vmatpush1.msra.mxu0 0.0
    %2266 = vmatprep.subr.mxu0 0.0
    %2267 = vmatpush1.msra.mxu0 0.0
    %2268 = vmatprep.subr.mxu0 0.0
    %2269 = vmatpush1.msra.mxu0 0.0
    %2270 = vmatprep.subr.mxu0 0.0
    %2271 = vmatpush1.msra.mxu0 0.0
    %2272 = vmatprep.subr.mxu0 0.0
    %2273 = vmatpush1.msra.mxu0 0.0
    %2274 = vmatprep.subr.mxu0 0.0
    %2275 = vmatpush1.msra.mxu0 0.0
    %2276 = vmatprep.subr.mxu0 0.0
    %2277 = vmatpush1.msra.mxu0 0.0
    %2278 = vmatprep.subr.mxu0 0.0
    %2279 = vmatpush1.msra.mxu0 0.0
    %2280 = vmatprep.subr.mxu0 0.0
    %2281 = vmatpush1.msra.mxu0 0.0
    %2282 = vmatprep.subr.mxu0 0.0
    %2283 = vmatpush1.msra.mxu0 0.0
    %2284 = vmatprep.subr.mxu0 0.0
    %2285 = vmatpush1.msra.mxu0 0.0
    %2286 = vmatprep.mubr.f32.mxu0 0.0
    %2287 = vmatmul.mubr.f32.gmra.mrb[0].mxu0 %v2220
    %v2288 = vpop.f32.mrb[0].mxu0
    %v2289 = vadd.f32 0.0, %v2288
    %v2290 = vpop.f32.mrb[0].mxu0
    %2291 = vdwg.mxu0
    %v2293 = vsel %vm442, %v2215, 0
    %2295 = vmatprep.subr.mxu0 0.0
    %2296 = vmatpush1.msra.mxu0 %v2218
    %2297 = vmatprep.subr.mxu0 0.0
    %2298 = vmatpush1.msra.mxu0 0.0
    %2299 = vmatprep.subr.mxu0 0.0
    %2300 = vmatpush1.msra.mxu0 0.0
    %2301 = vmatprep.subr.mxu0 0.0
    %2302 = vmatpush1.msra.mxu0 0.0
    %2303 = vmatprep.subr.mxu0 0.0
    %2304 = vmatpush1.msra.mxu0 0.0
    %2305 = vmatprep.subr.mxu0 0.0
    %2306 = vmatpush1.msra.mxu0 0.0
    %2307 = vmatprep.subr.mxu0 0.0
    %2308 = vmatpush1.msra.mxu0 0.0
    %2309 = vmatprep.subr.mxu0 0.0
    %2310 = vmatpush1.msra.mxu0 0.0
    %2311 = vmatprep.subr.mxu0 0.0
    %2312 = vmatpush1.msra.mxu0 0.0
    %2313 = vmatprep.subr.mxu0 0.0
    %2314 = vmatpush1.msra.mxu0 0.0
    %2315 = vmatprep.subr.mxu0 0.0
    %2316 = vmatpush1.msra.mxu0 0.0
    %2317 = vmatprep.subr.mxu0 0.0
    %2318 = vmatpush1.msra.mxu0 0.0
    %2319 = vmatprep.subr.mxu0 0.0
    %2320 = vmatpush1.msra.mxu0 0.0
    %2321 = vmatprep.subr.mxu0 0.0
    %2322 = vmatpush1.msra.mxu0 0.0
    %2323 = vmatprep.subr.mxu0 0.0
    %2324 = vmatpush1.msra.mxu0 0.0
    %2325 = vmatprep.subr.mxu0 0.0
    %2326 = vmatpush1.msra.mxu0 0.0
    %2327 = vmatprep.subr.mxu0 0.0
    %2328 = vmatpush1.msra.mxu0 0.0
    %2329 = vmatprep.subr.mxu0 0.0
    %2330 = vmatpush1.msra.mxu0 0.0
    %2331 = vmatprep.subr.mxu0 0.0
    %2332 = vmatpush1.msra.mxu0 0.0
    %2333 = vmatprep.subr.mxu0 0.0
    %2334 = vmatpush1.msra.mxu0 0.0
    %2335 = vmatprep.subr.mxu0 0.0
    %2336 = vmatpush1.msra.mxu0 0.0
    %2337 = vmatprep.subr.mxu0 0.0
    %2338 = vmatpush1.msra.mxu0 0.0
    %2339 = vmatprep.subr.mxu0 0.0
    %2340 = vmatpush1.msra.mxu0 0.0
    %2341 = vmatprep.subr.mxu0 0.0
    %2342 = vmatpush1.msra.mxu0 0.0
    %2343 = vmatprep.subr.mxu0 0.0
    %2344 = vmatpush1.msra.mxu0 0.0
    %2345 = vmatprep.subr.mxu0 0.0
    %2346 = vmatpush1.msra.mxu0 0.0
    %2347 = vmatprep.subr.mxu0 0.0
    %2348 = vmatpush1.msra.mxu0 0.0
    %2349 = vmatprep.subr.mxu0 0.0
    %2350 = vmatpush1.msra.mxu0 0.0
    %2351 = vmatprep.subr.mxu0 0.0
    %2352 = vmatpush1.msra.mxu0 0.0
    %2353 = vmatprep.subr.mxu0 0.0
    %2354 = vmatpush1.msra.mxu0 0.0
    %2355 = vmatprep.subr.mxu0 0.0
    %2356 = vmatpush1.msra.mxu0 0.0
    %2357 = vmatprep.subr.mxu0 0.0
    %2358 = vmatpush1.msra.mxu0 0.0
    %2359 = vmatprep.mubr.f32.mxu0 0.0
    %2360 = vmatmul.mubr.f32.gmra.mrb[0].mxu0 %v2293
    %v2361 = vpop.f32.mrb[0].mxu0
    %v2362 = vadd.f32 0.0, %v2361
    %v2363 = vpop.f32.mrb[0].mxu0
    %2364 = vdwg.mxu0
    %v2365 = vadd.f32 %v1882, %v2289
    %v2366 = vadd.f32 %v1883, %v2362
    %v2367 = vld [vmem:[%s8] sm:$0x1]
    %v2369 = vlaneseq
    %v2370 = vshrl.u32 %v2369, 7
    %v2371 = vsub.s32 0, %v2370
    %v2372 = vrot.slane %v2367, %v2371
    %v2374 = vadd.f32 %v2365, %v2372
    %v2375 = vadd.f32 %v2366, %v2372
    %2376 = vst.msk [vmem:[#allocation13] sm:$0xff] %vm140, %v2374
    %2377 = vst.msk [vmem:[#allocation13 + $0x8] sm:$0xff] %vm140, %v2375
    // Predicated region
    $region62: #{tpu_custom_call.1} parent=1 // pred_check
      _
    $region63: #{tpu_custom_call.1} parent=1 // pred_check_branch
      %2379 = sbr.rel (0) target = $region65
    $region64: #{tpu_custom_call.1} parent=1 // pred_region
      %s2381 = ssub.s32 256, 256
      %2382 = vsyncadd [#allocation4], %s2381
      %s2383 = sshll.u32 [#allocation13], 4
      %s2384 = int_to_ptr.vmem [resolvable:$true] %s2383
      %2389 = dma.vmem_to_hbm [thread:$0]  %s2384, 256, %s9, [#allocation4], 128, 128, 8
    $region65: #{tpu_custom_call.1} parent=1 // pred_fallthru
      _
    // Predicated region
    $region66: #{tpu_custom_call.1} parent=1 // pred_check
      _
    $region67: #{tpu_custom_call.1} parent=1 // pred_check_branch
      %2391 = sbr.rel (0) target = $region69
    $region68: #{tpu_custom_call.1} parent=1 // pred_region
      %2392 = dma.done [#allocation4], 256
    $region69: #{tpu_custom_call.1} parent=1 // pred_fallthru
      _
    %2393 = vsyncpa [#allocation3], 1
    %2394 = vsyncpa [#allocation6], 1
    %2395 = vsyncpa [#allocation9], 1
    %2396 = vsyncpa [#allocation12], 1
    %2397 = vsyncpa [#allocation4], 1

</llo_original>
